<compile_context>
chip_gen: v5e
topology: v5e:2x2
jax: 0.10.0
libtpu: 0.0.40
codegen_flags: <defaults>
</compile_context>

<pallas_src>
import numpy as np
import jax
import jax.numpy as jnp
from jax import lax
from jax.experimental import pallas as pl
from jax.experimental.pallas import tpu as pltpu


def _round_up(x, m):
    return ((x + m - 1) // m) * m


def _pick_vmem_limit_bytes():
    """Generation-aware VMEM budget: ~75% of physical VMEM (v7x: ~48 of 64 MiB,
    v5e/v6e: ~96 of 128 MiB), leaving headroom for compiler-internal scratch."""
    try:
        cap = int(pltpu.get_tpu_info().vmem_capacity_bytes)
    except Exception:
        cap = 64 * 1024 * 1024  # conservative fallback, safe on every generation
    return int(min(cap * 3 // 4, 100 * 1024 * 1024))


def prepare_gene_embedding_params(cat_weights, cont_weights, d_model, *, table_chunk=512):
    """One-time parameter packing (parameter setup, NOT per forward call).

    cat_weights:  {key: (vocab_k, d) f32}   nn.Embedding.weight
    cont_weights: {key: (d, vocab_k) f32}   nn.Linear.weight (pre-transposed once, here)

    Returns a params dict holding the stacked bf16 categorical table (row-padded to a
    multiple of the streaming chunk `tk`), the stacked f32 Linear weights (V_cont, d),
    per-key offsets/sizes and the chunking constants.
    """
    cat_keys = list(cat_weights.keys())
    cont_keys = list(cont_weights.keys())
    cat_sizes = [int(cat_weights[k].shape[0]) for k in cat_keys]
    cont_sizes = [int(cont_weights[k].shape[1]) for k in cont_keys]
    v_cat_total = sum(cat_sizes)
    v_cont_total = sum(cont_sizes)
    cat_offsets = [int(o) for o in np.cumsum([0] + cat_sizes[:-1])] if cat_sizes else []

    w_cat, tk, v_cat_pad = None, 0, 0
    if cat_keys:
        # Streaming chunk along the concatenated vocab axis (sublane dim -> multiple of 8).
        tk = min(int(table_chunk), _round_up(v_cat_total, 8))
        v_cat_pad = _round_up(v_cat_total, tk)
        w = jnp.concatenate([cat_weights[k] for k in cat_keys], axis=0)
        if v_cat_pad > v_cat_total:  # zero rows: never matched by in-range tokens
            w = jnp.concatenate(
                [w, jnp.zeros((v_cat_pad - v_cat_total, d_model), w.dtype)], axis=0)
        w_cat = w.astype(jnp.bfloat16)  # MXU operand, cast once here

    w_cont = None
    if cont_keys:
        # nn.Linear(V, d): y = x @ W.T  ->  store rows indexed by the vocab axis.
        w_cont = jnp.concatenate([cont_weights[k].T for k in cont_keys],
                                 axis=0).astype(jnp.float32)

    return dict(cat_keys=cat_keys, cont_keys=cont_keys,
                cat_sizes=cat_sizes, cont_sizes=cont_sizes, cat_offsets=cat_offsets,
                v_cat_total=v_cat_total, v_cat_pad=v_cat_pad, v_cont_total=v_cont_total,
                tk=tk, d_model=int(d_model), w_cat=w_cat, w_cont=w_cont)


def _make_kernel(n_cat, cat_offsets, v_cont_total, tk):
    """Ref order: [tok?, x?, w_cat_chunk?, w_cont?, out, acc_scratch]."""
    has_cat = n_cat > 0
    has_cont = v_cont_total > 0

    def kernel(*refs):
        it = iter(refs)
        tok_ref = next(it) if has_cat else None      # (tm, n_cat) int32
        x_ref = next(it) if has_cont else None       # (tm, V_cont) f32
        wcat_ref = next(it) if has_cat else None     # (tk, d)      bf16 chunk
        wcont_ref = next(it) if has_cont else None   # (V_cont, d)  f32
        out_ref = next(it)                           # (tm, d)
        acc_ref = next(it)                           # (tm, d)      f32 scratch
        tm = out_ref.shape[0]

        k = pl.program_id(1)

        @pl.when(k == 0)
        def _init():
            if has_cont:
                # Continuous Linear: K = V_cont is tiny, so do it on the VPU as broadcast
                # FMAs folded into the accumulator init (no MXU pass, no output RMW).
                x = x_ref[...]                      # (tm, V_cont) f32
                w = wcont_ref[...]                  # (V_cont, d)  f32
                acc = x[:, 0:1] * w[0:1, :]
                for j in range(1, v_cont_total):
                    acc = acc + x[:, j:j + 1] * w[j:j + 1, :]
                acc_ref[...] = acc
            else:
                acc_ref[...] = jnp.zeros_like(acc_ref)

        if has_cat:
            # One-hot over the current tk-wide chunk of the concatenated categorical
            # vocab.  Key ranges are disjoint, so OR of per-key matches == their sum.
            # Tokens outside this chunk simply match nothing.
            tok = tok_ref[...]                                          # (tm, n_cat)
            col = lax.broadcasted_iota(jnp.int32, (tm, tk), 1) + k * tk  # global column
            hit = None
            for j in range(n_cat):
                m = (tok[:, j:j + 1] + cat_offsets[j]) == col           # (tm, tk)
                hit = m if hit is None else jnp.logical_or(hit, m)
            # NOTE: the review suggests a direct bool->bf16 cast; we keep the f32 hop
            # because i1->bf16 converts are not guaranteed to lower on every Mosaic
            # version, and the extra VPU pass over (tm, tk) is well below the MXU dot
            # cost for this chunk and overlaps with it.
            onehot = hit.astype(jnp.float32).astype(jnp.bfloat16)
            acc_ref[...] += jnp.dot(onehot, wcat_ref[...],
                                    preferred_element_type=jnp.float32)

        @pl.when(k == pl.num_programs(1) - 1)
        def _finalize():
            out_ref[...] = acc_ref[...].astype(out_ref.dtype)

    return kernel


def gene_expression_embedding(cat_tokens, cont_values, params, *, tm=512,
                              out_dtype=jnp.float32):
    """cat_tokens:  {key: (n, c) int}        categorical token ids
       cont_values: {key: (n, c, vocab_k)}   continuous values
       params: from prepare_gene_embedding_params
       returns (n, c, d_model) in out_dtype (f32 to match the PyTorch module; pass
       jnp.bfloat16 to halve the writeback stream if downstream accepts it)."""
    cat_keys, cont_keys = params["cat_keys"], params["cont_keys"]
    n_cat = len(cat_keys)
    v_cont_total = params["v_cont_total"]
    d_model = params["d_model"]
    tk = params["tk"]

    probe = cat_tokens[cat_keys[0]] if n_cat else cont_values[cont_keys[0]]
    n, c = int(probe.shape[0]), int(probe.shape[1])
    M = n * c

    tm = min(int(tm), _round_up(M, 8))
    grid_m = int(pl.cdiv(M, tm))                      # ragged last tile handled by Pallas
    grid_k = (params["v_cat_pad"] // tk) if n_cat else 1

    inputs, in_specs = [], []
    if n_cat:
        # Tiny per-call packing (M x n_cat int32).  Single-key case avoids the stack.
        if n_cat == 1:
            tok = cat_tokens[cat_keys[0]].reshape(M, 1).astype(jnp.int32)
        else:
            tok = jnp.stack([cat_tokens[k].reshape(M) for k in cat_keys],
                            axis=1).astype(jnp.int32)
        inputs.append(tok)
        in_specs.append(pl.BlockSpec((tm, n_cat), lambda i, k: (i, 0)))
    if v_cont_total:
        # Continuous values stay f32 (few columns; better accuracy than bf16).
        if len(cont_keys) == 1:
            x = cont_values[cont_keys[0]].reshape(M, -1).astype(jnp.float32)
        else:
            x = jnp.concatenate([cont_values[k].reshape(M, -1) for k in cont_keys],
                                axis=1).astype(jnp.float32)
        inputs.append(x)
        in_specs.append(pl.BlockSpec((tm, v_cont_total), lambda i, k: (i, 0)))
    if n_cat:
        inputs.append(params["w_cat"])
        in_specs.append(pl.BlockSpec((tk, d_model), lambda i, k: (k, 0)))  # streamed chunks
    if v_cont_total:
        inputs.append(params["w_cont"])
        in_specs.append(pl.BlockSpec((v_cont_total, d_model), lambda i, k: (0, 0)))

    kernel = _make_kernel(n_cat, params["cat_offsets"], v_cont_total, tk)

    out = pl.pallas_call(
        kernel,
        out_shape=jax.ShapeDtypeStruct((M, d_model), out_dtype),
        grid=(grid_m, grid_k),
        in_specs=in_specs,
        out_specs=pl.BlockSpec((tm, d_model), lambda i, k: (i, 0)),
        scratch_shapes=[pltpu.VMEM((tm, d_model), jnp.float32)],
        compiler_params=pltpu.CompilerParams(
            dimension_semantics=("parallel", "arbitrary"),
            vmem_limit_bytes=_pick_vmem_limit_bytes(),
        ),
    )(*inputs)
    return out.reshape(n, c, d_model)


def reference(cat_tokens, cat_weights, cont_values, cont_weights):
    """Pure-JAX f32 reference matching the PyTorch module."""
    out = 0.0
    for k, t in cat_tokens.items():
        out = out + cat_weights[k][t]                              # Embedding lookup
    for k, x in cont_values.items():
        out = out + jnp.einsum("ncv,dv->ncd", x, cont_weights[k])  # Linear, no bias
    return out


if __name__ == "__main__":
    key = jax.random.PRNGKey(0)
    n, c, d_model = 8, 64, 128                      # M = 512 rows -> 2 row tiles @ tm=256
    categorical_vocab_sizes = {"gene_id": 32, "assay": 8}
    continuous_vocab_sizes = {"gene_value": 3}

    keys = jax.random.split(key, 8)
    ki = 0

    # Deterministic parameter init (normal, std=0.02) — stands in for
    # create_initializer(embeddings_initializer).
    cat_weights, cont_weights = {}, {}
    for name, v in categorical_vocab_sizes.items():
        cat_weights[name] = 0.02 * jax.random.normal(keys[ki], (v, d_model), jnp.float32)
        ki += 1
    for name, v in continuous_vocab_sizes.items():
        cont_weights[name] = 0.02 * jax.random.normal(keys[ki], (d_model, v), jnp.float32)
        ki += 1

    # Example inputs.
    cat_tokens, cont_values = {}, {}
    for name, v in categorical_vocab_sizes.items():
        cat_tokens[name] = jax.random.randint(keys[ki], (n, c), 0, v, jnp.int32)
        ki += 1
    for name, v in continuous_vocab_sizes.items():
        cont_values[name] = jax.random.normal(keys[ki], (n, c, v), jnp.float32)
        ki += 1

    # One-time parameter packing (stacked bf16 categorical table, f32 Linear weights).
    params = prepare_gene_embedding_params(cat_weights, cont_weights, d_model,
                                           table_chunk=512)

    out = gene_expression_embedding(cat_tokens, cont_values, params, tm=256)
    out = jax.block_until_ready(out)

    ref = reference(cat_tokens, cat_weights, cont_values, cont_weights)
    assert out.shape == (n, c, d_model)
    # Categorical tables are bf16 MXU operands (f32 accumulation); continuous path is
    # full f32 on the VPU, so the tolerance only covers the bf16 table rounding.
    np.testing.assert_allclose(np.asarray(out), np.asarray(ref), rtol=2e-2, atol=1e-3)
    print("KERNEL_OK")
</pallas_src>

<mosaic_0001>
module attributes {stable_mosaic.version = 11 : i64} {
  func.func @kernel(%arg0: i32, %arg1: i32, %arg2: memref<256x2xi32, #tpu.memory_space<vmem>>, %arg3: memref<256x3xf32, #tpu.memory_space<vmem>>, %arg4: memref<40x128xbf16, #tpu.memory_space<vmem>>, %arg5: memref<3x128xf32, #tpu.memory_space<vmem>>, %arg6: memref<256x128xf32, #tpu.memory_space<vmem>>, %arg7: memref<256x128xf32, #tpu.memory_space<vmem>>) attributes {dimension_semantics = [#tpu.dimension_semantics<parallel>, #tpu.dimension_semantics<arbitrary>], iteration_bounds = array<i64: 2, 1>, scalar_prefetch = 0 : i64, scratch_operands = 1 : i64, tpu.core_type = #tpu.core_type<tc>, window_params = [{transform_indices = @transform_0, window_bounds = array<i64: 256, 2>}, {transform_indices = @transform_1, window_bounds = array<i64: 256, 3>}, {transform_indices = @transform_2, window_bounds = array<i64: 40, 128>}, {pipeline_mode = #tpu.pipeline_mode<synchronous>, transform_indices = @transform_3, window_bounds = array<i64: 3, 128>}, {transform_indices = @transform_4, window_bounds = array<i64: 256, 128>}]} {
    %c0_i32 = arith.constant 0 : i32
    %0 = arith.cmpi eq, %arg1, %c0_i32 : i32
    %1 = arith.extui %0 : i1 to i32
    %c0_i32_0 = arith.constant 0 : i32
    %2 = arith.cmpi ne, %1, %c0_i32_0 : i32
    scf.if %2 {
      %c0_11 = arith.constant 0 : index
      %c0_12 = arith.constant 0 : index
      %30 = vector.load %arg3[%c0_11, %c0_12] : memref<256x3xf32, #tpu.memory_space<vmem>>, vector<256x3xf32>
      %c0_13 = arith.constant 0 : index
      %c0_14 = arith.constant 0 : index
      %31 = vector.load %arg5[%c0_13, %c0_14] : memref<3x128xf32, #tpu.memory_space<vmem>>, vector<3x128xf32>
      %32 = vector.extract_strided_slice %30 {offsets = [0, 0], sizes = [256, 1], strides = [1, 1]} : vector<256x3xf32> to vector<256x1xf32>
      %33 = vector.extract_strided_slice %31 {offsets = [0, 0], sizes = [1, 128], strides = [1, 1]} : vector<3x128xf32> to vector<1x128xf32>
      %34 = vector.broadcast %32 : vector<256x1xf32> to vector<256x128xf32>
      %35 = vector.broadcast %33 : vector<1x128xf32> to vector<256x128xf32>
      %36 = arith.mulf %34, %35 : vector<256x128xf32>
      %37 = vector.extract_strided_slice %30 {offsets = [0, 1], sizes = [256, 1], strides = [1, 1]} : vector<256x3xf32> to vector<256x1xf32>
      %38 = vector.extract_strided_slice %31 {offsets = [1, 0], sizes = [1, 128], strides = [1, 1]} : vector<3x128xf32> to vector<1x128xf32>
      %39 = vector.broadcast %37 : vector<256x1xf32> to vector<256x128xf32>
      %40 = vector.broadcast %38 : vector<1x128xf32> to vector<256x128xf32>
      %41 = arith.mulf %39, %40 : vector<256x128xf32>
      %42 = arith.addf %36, %41 : vector<256x128xf32>
      %43 = vector.extract_strided_slice %30 {offsets = [0, 2], sizes = [256, 1], strides = [1, 1]} : vector<256x3xf32> to vector<256x1xf32>
      %44 = vector.extract_strided_slice %31 {offsets = [2, 0], sizes = [1, 128], strides = [1, 1]} : vector<3x128xf32> to vector<1x128xf32>
      %45 = vector.broadcast %43 : vector<256x1xf32> to vector<256x128xf32>
      %46 = vector.broadcast %44 : vector<1x128xf32> to vector<256x128xf32>
      %47 = arith.mulf %45, %46 : vector<256x128xf32>
      %48 = arith.addf %42, %47 : vector<256x128xf32>
      %c0_15 = arith.constant 0 : index
      %c0_16 = arith.constant 0 : index
      %49 = vector.load %arg7[%c0_15, %c0_16] : memref<256x128xf32, #tpu.memory_space<vmem>>, vector<256x128xf32>
      tpu.vector_store %arg7[%c0_15, %c0_16], %48 {strides = array<i32>} : memref<256x128xf32, #tpu.memory_space<vmem>>, vector<256x128xf32>,
    } else {
    }
    %c0 = arith.constant 0 : index
    %c0_1 = arith.constant 0 : index
    %3 = vector.load %arg2[%c0, %c0_1] : memref<256x2xi32, #tpu.memory_space<vmem>>, vector<256x2xi32>
    %4 = tpu.iota {dimensions = array<i32: 1>} : vector<256x40xi32>
    %c40_i32 = arith.constant 40 : i32
    %5 = arith.muli %arg1, %c40_i32 : i32
    %6 = vector.broadcast %5 : i32 to vector<256x40xi32>
    %7 = arith.addi %4, %6 : vector<256x40xi32>
    %8 = vector.extract_strided_slice %3 {offsets = [0, 0], sizes = [256, 1], strides = [1, 1]} : vector<256x2xi32> to vector<256x1xi32>
    %c0_i32_2 = arith.constant 0 : i32
    %9 = vector.broadcast %c0_i32_2 : i32 to vector<256x1xi32>
    %10 = arith.addi %8, %9 : vector<256x1xi32>
    %11 = vector.broadcast %10 : vector<256x1xi32> to vector<256x40xi32>
    %12 = arith.cmpi eq, %11, %7 : vector<256x40xi32>
    %13 = vector.extract_strided_slice %3 {offsets = [0, 1], sizes = [256, 1], strides = [1, 1]} : vector<256x2xi32> to vector<256x1xi32>
    %c32_i32 = arith.constant 32 : i32
    %14 = vector.broadcast %c32_i32 : i32 to vector<256x1xi32>
    %15 = arith.addi %13, %14 : vector<256x1xi32>
    %16 = vector.broadcast %15 : vector<256x1xi32> to vector<256x40xi32>
    %17 = arith.cmpi eq, %16, %7 : vector<256x40xi32>
    %18 = arith.ori %12, %17 : vector<256x40xi1>
    %19 = arith.extui %18 : vector<256x40xi1> to vector<256x40xi32>
    %20 = arith.sitofp %19 : vector<256x40xi32> to vector<256x40xf32>
    %21 = arith.truncf %20 : vector<256x40xf32> to vector<256x40xbf16>
    %c0_3 = arith.constant 0 : index
    %c0_4 = arith.constant 0 : index
    %22 = vector.load %arg7[%c0_3, %c0_4] : memref<256x128xf32, #tpu.memory_space<vmem>>, vector<256x128xf32>
    %c0_5 = arith.constant 0 : index
    %c0_6 = arith.constant 0 : index
    %23 = vector.load %arg4[%c0_5, %c0_6] : memref<40x128xbf16, #tpu.memory_space<vmem>>, vector<40x128xbf16>
    %cst = arith.constant dense<0.000000e+00> : vector<256x128xf32>
    %24 = tpu.matmul %21, %23, %cst {dimension_numbers = #tpu.dot_dimension_numbers<[1], [0], [0], [1], [0, 0, 1, 1], [], []>} : vector<256x40xbf16>, vector<40x128xbf16>, vector<256x128xf32> -> vector<256x128xf32>
    %25 = arith.addf %22, %24 : vector<256x128xf32>
    %c0_7 = arith.constant 0 : index
    %c0_8 = arith.constant 0 : index
    %26 = vector.load %arg7[%c0_7, %c0_8] : memref<256x128xf32, #tpu.memory_space<vmem>>, vector<256x128xf32>
    tpu.vector_store %arg7[%c0_7, %c0_8], %25 {strides = array<i32>} : memref<256x128xf32, #tpu.memory_space<vmem>>, vector<256x128xf32>,
    %c0_i32_9 = arith.constant 0 : i32
    %27 = arith.cmpi eq, %arg1, %c0_i32_9 : i32
    %28 = arith.extui %27 : i1 to i32
    %c0_i32_10 = arith.constant 0 : i32
    %29 = arith.cmpi ne, %28, %c0_i32_10 : i32
    scf.if %29 {
      %c0_11 = arith.constant 0 : index
      %c0_12 = arith.constant 0 : index
      %30 = vector.load %arg7[%c0_11, %c0_12] : memref<256x128xf32, #tpu.memory_space<vmem>>, vector<256x128xf32>
      %c0_13 = arith.constant 0 : index
      %c0_14 = arith.constant 0 : index
      %31 = vector.load %arg6[%c0_13, %c0_14] : memref<256x128xf32, #tpu.memory_space<vmem>>, vector<256x128xf32>
      tpu.vector_store %arg6[%c0_13, %c0_14], %30 {strides = array<i32>} : memref<256x128xf32, #tpu.memory_space<vmem>>, vector<256x128xf32>,
    } else {
    }
    return
  }
  func.func @transform_0(%arg0: i32, %arg1: i32) -> (i32, i32) {
    %c0_i32 = arith.constant 0 : i32
    %c0_i32_0 = arith.constant 0 : i32
    return %arg0, %c0_i32 : i32, i32
  }
  func.func @transform_1(%arg0: i32, %arg1: i32) -> (i32, i32) {
    %c0_i32 = arith.constant 0 : i32
    %c0_i32_0 = arith.constant 0 : i32
    return %arg0, %c0_i32 : i32, i32
  }
  func.func @transform_2(%arg0: i32, %arg1: i32) -> (i32, i32) {
    %c0_i32 = arith.constant 0 : i32
    %c0_i32_0 = arith.constant 0 : i32
    return %arg1, %c0_i32 : i32, i32
  }
  func.func @transform_3(%arg0: i32, %arg1: i32) -> (i32, i32) {
    %c0_i32 = arith.constant 0 : i32
    %c0_i32_0 = arith.constant 0 : i32
    %c0_i32_1 = arith.constant 0 : i32
    return %c0_i32, %c0_i32_0 : i32, i32
  }
  func.func @transform_4(%arg0: i32, %arg1: i32) -> (i32, i32) {
    %c0_i32 = arith.constant 0 : i32
    %c0_i32_0 = arith.constant 0 : i32
    return %arg0, %c0_i32 : i32, i32
  }
}

</mosaic_0001>

<llo_original>
// kernel: tpu_custom_call.1
$region0: #{tpu_custom_call.1}
  #allocation0 [shape = 'u32[]', space=smem, size = 0x4, offset = 0x4, fixed_abs, tag = 'smem constant byte address 0x4 - core index']
  #allocation1 [shape = 'u32[72,128]{1,0:T(1,128)}', space=vmem, size = 0x9000, scoped, tag = 'internal scratch']
  #allocation2 [shape = 'f32[256,128]{1,0:T(8,128)}', space=vmem, size = 0x20000, scoped, tag = 'scratch operand']
  %s0 = inlined_call_operand.vmem [shape: s32[512,2], index: 0, kind: input, shape index: {}]
  %s1 = inlined_call_operand.vmem [shape: f32[512,3], index: 1, kind: input, shape index: {}]
  %s2 = inlined_call_operand.vmem [shape: bf16[40,128], index: 2, kind: input, shape index: {}]
  %s3 = inlined_call_operand.vmem [shape: f32[3,128], index: 3, kind: input, shape index: {}]
  %s4 = inlined_call_operand.hbm [shape: f32[512,128], index: 4, kind: output, shape index: {}]
  %s5 = sld [smem:[#allocation0]]
  $region57: #{tpu_custom_call.1} parent=0
    _
  %s7 = ssub.s32 1, %s5
  %s8 = scalar_select 0, %s7, %s5
  $region1: #{tpu_custom_call.1} parent=0
    #allocation3 [shape = 'u8[262144]{0}', space=vmem, size = 0x40000, scoped, tag = 'output window, operand 0']
    #allocation4 [shape = 's32[2]{0}', space=sflag, size = 0x8, scoped, tag = 'scoped memory for tpu_custom_call.1']
    %9 = vsyncpa [#allocation4], 0
    %s10 = scalar_lea.sflag [#allocation4], 1
    %11 = vsyncpa %s10, 0
    loop: start=0, step=1, limit=4
    $region2: #{tpu_custom_call.1} parent=1 // loop_pre_header
      _
    $region3: #{tpu_custom_call.1} parent=1 // loop_header
      %s13 = sphi 0, %s17
      %p14 = scmp.ge.s32.totalorder %s13, 4
      %s20 = sphi 0, %s32
      %s21 = sphi 0, %s28
      %s22 = sphi 0, %s20
      %s23 = sphi 0, %s21
      %s24 = sphi 0, %s22
      %s25 = sphi 0, %s23
      %s35 = sphi 0, %s37
      %s38 = sphi 0, %s35
      %s39 = sphi 0, %s38
      %s55 = sphi 0, %s39
      %s61 = sphi 0, %s63
      %s64 = sphi 0, %s61
      %s65 = sphi 0, %s64
      %s81 = sphi 0, %s65
      %s87 = sphi 0, %s89
      %s90 = sphi 0, %s87
      %s91 = sphi 0, %s90
      %s107 = sphi 0, %s91
      %s111 = sphi 0, %s111
      %s113 = sphi 0, %s111
      %s114 = sphi 0, %s113
      %s128 = sphi 0, %s114
      %s134 = sphi 0, %s136
      %s137 = sphi 0, %s134
      %s138 = sphi 0, %s137
      %s154 = sphi 0, %s138
    $region4: #{tpu_custom_call.1} parent=1 // loop_header_branch
      %16 = sbr.rel (%p14) target = $region8
    $region5: #{tpu_custom_call.1} parent=1 // loop_body
      %s18 = ssub.s32 %s13, 1
      %s19 = ssub.s32 %s13, 2
      %s26 = sadd.s32 1, %s21
      %p27 = scmp.ge.s32.totalorder %s26, 1
      %s28 = scalar_select %p27, 0, %s26
      %s29 = sadd.s32 1, %s20
      %s30 = scalar_select %p27, %s29, %s20
      %p31 = scmp.ge.s32.totalorder %s30, 2
      %s32 = scalar_select %p31, 0, %s30
      %s33 = ssub.s32 %s20, %s32
      %p34 = scmp.eq.s32.totalorder %s33, 0
      %s36 = sadd.s32 %s35, 1
      %s37 = scalar_select %p34, %s35, %s36
      %p40 = pneg %p34
      %p41 = scmp.eq.s32.totalorder %s13, 1
      %p42 = por %p40, %p41
      %p43 = scmp.ne.s32.totalorder %s35, %s38
      %p44 = scmp.eq.s32.totalorder %s13, 0
      %p45 = por %p43, %p44
      %p46 = scmp.ne.s32.totalorder %s35, %s38
      %p47 = scmp.eq.s32.totalorder %s18, 1
      %p48 = por %p46, %p47
      %p49 = scmp.ne.s32.totalorder %s38, %s39
      %p50 = scmp.eq.s32.totalorder %s18, 0
      %p51 = por %p49, %p50
      %p52 = scmp.ne.s32.totalorder %s38, %s39
      %p53 = scmp.eq.s32.totalorder %s19, 1
      %p54 = por %p52, %p53
      %p56 = scmp.ne.s32.totalorder %s39, %s55
      %p57 = scmp.eq.s32.totalorder %s19, 0
      %p58 = por %p56, %p57
      %s59 = ssub.s32 %s20, %s32
      %p60 = scmp.eq.s32.totalorder %s59, 0
      %s62 = sadd.s32 %s61, 1
      %s63 = scalar_select %p60, %s61, %s62
      %p66 = pneg %p60
      %p67 = scmp.eq.s32.totalorder %s13, 1
      %p68 = por %p66, %p67
      %p69 = scmp.ne.s32.totalorder %s61, %s64
      %p70 = scmp.eq.s32.totalorder %s13, 0
      %p71 = por %p69, %p70
      %p72 = scmp.ne.s32.totalorder %s61, %s64
      %p73 = scmp.eq.s32.totalorder %s18, 1
      %p74 = por %p72, %p73
      %p75 = scmp.ne.s32.totalorder %s64, %s65
      %p76 = scmp.eq.s32.totalorder %s18, 0
      %p77 = por %p75, %p76
      %p78 = scmp.ne.s32.totalorder %s64, %s65
      %p79 = scmp.eq.s32.totalorder %s19, 1
      %p80 = por %p78, %p79
      %p82 = scmp.ne.s32.totalorder %s65, %s81
      %p83 = scmp.eq.s32.totalorder %s19, 0
      %p84 = por %p82, %p83
      %s85 = ssub.s32 %s21, %s28
      %p86 = scmp.eq.s32.totalorder %s85, 0
      %s88 = sadd.s32 %s87, 1
      %s89 = scalar_select %p86, %s87, %s88
      %p92 = pneg %p86
      %p93 = scmp.eq.s32.totalorder %s13, 1
      %p94 = por %p92, %p93
      %p95 = scmp.ne.s32.totalorder %s87, %s90
      %p96 = scmp.eq.s32.totalorder %s13, 0
      %p97 = por %p95, %p96
      %p98 = scmp.ne.s32.totalorder %s87, %s90
      %p99 = scmp.eq.s32.totalorder %s18, 1
      %p100 = por %p98, %p99
      %p101 = scmp.ne.s32.totalorder %s90, %s91
      %p102 = scmp.eq.s32.totalorder %s18, 0
      %p103 = por %p101, %p102
      %p104 = scmp.ne.s32.totalorder %s90, %s91
      %p105 = scmp.eq.s32.totalorder %s19, 1
      %p106 = por %p104, %p105
      %p108 = scmp.ne.s32.totalorder %s91, %s107
      %p109 = scmp.eq.s32.totalorder %s19, 0
      %p110 = por %p108, %p109
      %s112 = sadd.s32 %s111, 1
      %p115 = scmp.eq.s32.totalorder %s13, 1
      %p116 = scmp.ne.s32.totalorder %s111, %s113
      %p117 = scmp.eq.s32.totalorder %s13, 0
      %p118 = por %p116, %p117
      %p119 = scmp.ne.s32.totalorder %s111, %s113
      %p120 = scmp.eq.s32.totalorder %s18, 1
      %p121 = por %p119, %p120
      %p122 = scmp.ne.s32.totalorder %s113, %s114
      %p123 = scmp.eq.s32.totalorder %s18, 0
      %p124 = por %p122, %p123
      %p125 = scmp.ne.s32.totalorder %s113, %s114
      %p126 = scmp.eq.s32.totalorder %s19, 1
      %p127 = por %p125, %p126
      %p129 = scmp.ne.s32.totalorder %s114, %s128
      %p130 = scmp.eq.s32.totalorder %s19, 0
      %p131 = por %p129, %p130
      %s132 = ssub.s32 %s20, %s32
      %p133 = scmp.eq.s32.totalorder %s132, 0
      %s135 = sadd.s32 %s134, 1
      %s136 = scalar_select %p133, %s134, %s135
      %p139 = pneg %p133
      %p140 = scmp.eq.s32.totalorder %s13, 1
      %p141 = por %p139, %p140
      %p142 = scmp.ne.s32.totalorder %s134, %s137
      %p143 = scmp.eq.s32.totalorder %s13, 0
      %p144 = por %p142, %p143
      %p145 = scmp.ne.s32.totalorder %s134, %s137
      %p146 = scmp.eq.s32.totalorder %s18, 1
      %p147 = por %p145, %p146
      %p148 = scmp.ne.s32.totalorder %s137, %s138
      %p149 = scmp.eq.s32.totalorder %s18, 0
      %p150 = por %p148, %p149
      %p151 = scmp.ne.s32.totalorder %s137, %s138
      %p152 = scmp.eq.s32.totalorder %s19, 1
      %p153 = por %p151, %p152
      %p155 = scmp.ne.s32.totalorder %s138, %s154
      %p156 = scmp.eq.s32.totalorder %s19, 0
      %p157 = por %p155, %p156
      %p158 = scmp.le.s32.totalorder 1, %s13
      %p159 = scmp.lt.s32.totalorder %s13, 3
      %p160 = pnand %p158, %p159
      %p161 = pneg %p160
      // Predicated region
      $region9: #{tpu_custom_call.1} parent=5 // pred_check
        _
      $region10: #{tpu_custom_call.1} parent=5 // pred_check_branch
        %163 = sbr.rel (%p160) target = $region12
      $region11: #{tpu_custom_call.1} parent=5 // pred_region
        %s164 = ssub.s32 %s13, 1
        // Predicated region
        $region13: #{tpu_custom_call.1} parent=11 // pred_check
          %p165 = pneg %p103
        $region14: #{tpu_custom_call.1} parent=11 // pred_check_branch
          %167 = sbr.rel (%p165) target = $region16
        $region15: #{tpu_custom_call.1} parent=11 // pred_region
          %s168 = smul.u32 5, %s23
          %p169 = scmp.lt.s32.totalorder %s168, 4
          %s170 = scalar_select %p169, %s168, 4
          %s171 = smul.addr %s170, 4
          %s172 = scalar_lea.vmem %s2, %s171
          %s173 = smul.u32 5, %s23
        $region16: #{tpu_custom_call.1} parent=11 // pred_fallthru
          _
        // Predicated region
        $region17: #{tpu_custom_call.1} parent=11 // pred_check
          %p174 = pneg %p124
        $region18: #{tpu_custom_call.1} parent=11 // pred_check_branch
          %176 = sbr.rel (%p174) target = $region20
        $region19: #{tpu_custom_call.1} parent=11 // pred_region
          _
        $region20: #{tpu_custom_call.1} parent=11 // pred_fallthru
          _
      $region12: #{tpu_custom_call.1} parent=5 // pred_fallthru
        _
      %p177 = scmp.lt.s32.totalorder %s13, 2
      // Predicated region
      $region21: #{tpu_custom_call.1} parent=5 // pred_check
        %p178 = pneg %p177
      $region22: #{tpu_custom_call.1} parent=5 // pred_check_branch
        %180 = sbr.rel (%p178) target = $region24
      $region23: #{tpu_custom_call.1} parent=5 // pred_region
        // Predicated region
        $region25: #{tpu_custom_call.1} parent=23 // pred_check
          %p181 = pneg %p45
        $region26: #{tpu_custom_call.1} parent=23 // pred_check_branch
          %183 = sbr.rel (%p181) target = $region28
        $region27: #{tpu_custom_call.1} parent=23 // pred_region
          %s184 = smul.u32 32, %s20
          %p185 = scmp.lt.s32.totalorder %s184, 63
          %s186 = scalar_select %p185, %s184, 63
          %s187 = smul.addr %s186, 8
          %s188 = scalar_lea.vmem %s0, %s187
          %s189 = smul.u32 32, %s20
        $region28: #{tpu_custom_call.1} parent=23 // pred_fallthru
          _
        // Predicated region
        $region29: #{tpu_custom_call.1} parent=23 // pred_check
          %p190 = pneg %p71
        $region30: #{tpu_custom_call.1} parent=23 // pred_check_branch
          %192 = sbr.rel (%p190) target = $region32
        $region31: #{tpu_custom_call.1} parent=23 // pred_region
          %s193 = smul.u32 32, %s20
          %p194 = scmp.lt.s32.totalorder %s193, 63
          %s195 = scalar_select %p194, %s193, 63
          %s196 = smul.addr %s195, 8
          %s197 = scalar_lea.vmem %s1, %s196
          %s198 = smul.u32 32, %s20
        $region32: #{tpu_custom_call.1} parent=23 // pred_fallthru
          _
      $region24: #{tpu_custom_call.1} parent=5 // pred_fallthru
        _
      %p199 = scmp.le.s32.totalorder 1, %s13
      %p200 = scmp.lt.s32.totalorder %s13, 3
      %p201 = pnand %p199, %p200
      %p202 = pneg %p201
      // Predicated region
      $region33: #{tpu_custom_call.1} parent=5 // pred_check
        _
      $region34: #{tpu_custom_call.1} parent=5 // pred_check_branch
        %204 = sbr.rel (%p201) target = $region36
      $region35: #{tpu_custom_call.1} parent=5 // pred_region
        %s205 = ssub.s32 %s13, 1
        %s206 = smul.u32 32, %s22
        %p207 = scmp.lt.s32.totalorder %s206, 63
        %s208 = scalar_select %p207, %s206, 63
        %s209 = smul.addr %s208, 8
        %s210 = scalar_lea.vmem %s0, %s209
        %p211 = pneg %p51
        %p212 = pneg %p48
        %s213 = smul.u32 32, %s22
        %p214 = scmp.lt.s32.totalorder %s213, 63
        %s215 = scalar_select %p214, %s213, 63
        %s216 = smul.addr %s215, 8
        %s217 = scalar_lea.vmem %s1, %s216
        %p218 = pneg %p77
        %p219 = pneg %p74
        %s220 = smul.u32 5, %s23
        %p221 = scmp.lt.s32.totalorder %s220, 4
        %s222 = scalar_select %p221, %s220, 4
        %s223 = smul.addr %s222, 4
        %s224 = scalar_lea.vmem %s2, %s223
        %p225 = pneg %p103
        %p226 = pneg %p100
        %p227 = pneg %p124
        %p228 = pneg %p121
        %p229 = pneg %p150
        %p230 = pneg %p147
        %s231 = sand.u32 %s137, 1
        %s232 = scalar_lea.sflag [#allocation4], %s231
        %s233 = sand.u32 %s137, 1
        %s234 = smul.addr %s233, 256
        %s235 = scalar_lea.vmem [#allocation3], %s234
        %s236 = smul.u32 32, %s22
        %p237 = scmp.lt.s32.totalorder %s236, 63
        %s238 = scalar_select %p237, %s236, 63
        %s239 = smul.addr %s238, 8
        %s240 = scalar_lea.vmem %s0, %s239
        %s241 = smul.u32 32, %s22
        %s242 = smul.u32 32, %s22
        %p243 = scmp.lt.s32.totalorder %s242, 63
        %s244 = scalar_select %p243, %s242, 63
        %s245 = smul.addr %s244, 8
        %s246 = scalar_lea.vmem %s1, %s245
        %s247 = smul.u32 32, %s22
        %s248 = smul.u32 5, %s23
        %p249 = scmp.lt.s32.totalorder %s248, 4
        %s250 = scalar_select %p249, %s248, 4
        %s251 = smul.addr %s250, 4
        %s252 = scalar_lea.vmem %s2, %s251
        %s253 = smul.u32 5, %s23
        %s254 = smul.u32 32, %s22
        %p256 = scmp.eq.s32.totalorder %s23, 0
        // Predicated region
        $region37: #{tpu_custom_call.1} parent=35 // pred_check
          %p257 = pneg %p256
        $region38: #{tpu_custom_call.1} parent=35 // pred_check_branch
          %259 = sbr.rel (%p257) target = $region40
        $region39: #{tpu_custom_call.1} parent=35 // pred_region
          %v260 = vld [vmem:[%s246] sm:$0xff]
          %v261 = vld [vmem:[%s246 + $0x8] sm:$0xff]
          %v262 = vld [vmem:[%s246 + $0x10] sm:$0xff]
          %v263 = vld [vmem:[%s246 + $0x18] sm:$0xff]
          %v264 = vld [vmem:[%s246 + $0x20] sm:$0xff]
          %v265 = vld [vmem:[%s246 + $0x28] sm:$0xff]
          %v266 = vld [vmem:[%s246 + $0x30] sm:$0xff]
          %v267 = vld [vmem:[%s246 + $0x38] sm:$0xff]
          %v268 = vld [vmem:[%s246 + $0x40] sm:$0xff]
          %v269 = vld [vmem:[%s246 + $0x48] sm:$0xff]
          %v270 = vld [vmem:[%s246 + $0x50] sm:$0xff]
          %v271 = vld [vmem:[%s246 + $0x58] sm:$0xff]
          %v272 = vld [vmem:[%s246 + $0x60] sm:$0xff]
          %v273 = vld [vmem:[%s246 + $0x68] sm:$0xff]
          %v274 = vld [vmem:[%s246 + $0x70] sm:$0xff]
          %v275 = vld [vmem:[%s246 + $0x78] sm:$0xff]
          %v276 = vld [vmem:[%s246 + $0x80] sm:$0xff]
          %v277 = vld [vmem:[%s246 + $0x88] sm:$0xff]
          %v278 = vld [vmem:[%s246 + $0x90] sm:$0xff]
          %v279 = vld [vmem:[%s246 + $0x98] sm:$0xff]
          %v280 = vld [vmem:[%s246 + $0xa0] sm:$0xff]
          %v281 = vld [vmem:[%s246 + $0xa8] sm:$0xff]
          %v282 = vld [vmem:[%s246 + $0xb0] sm:$0xff]
          %v283 = vld [vmem:[%s246 + $0xb8] sm:$0xff]
          %v284 = vld [vmem:[%s246 + $0xc0] sm:$0xff]
          %v285 = vld [vmem:[%s246 + $0xc8] sm:$0xff]
          %v286 = vld [vmem:[%s246 + $0xd0] sm:$0xff]
          %v287 = vld [vmem:[%s246 + $0xd8] sm:$0xff]
          %v288 = vld [vmem:[%s246 + $0xe0] sm:$0xff]
          %v289 = vld [vmem:[%s246 + $0xe8] sm:$0xff]
          %v290 = vld [vmem:[%s246 + $0xf0] sm:$0xff]
          %v291 = vld [vmem:[%s246 + $0xf8] sm:$0xff]
          %v292 = vld [vmem:[%s3] sm:$0x7]
          %294 = vset.pattern.permute.xlu0 0
          %295 = vperm.xlu0 %294, %v260
          %v296 = vpop.permute.xlu0 %295
          %299 = vset.pattern.permute.xlu0 0
          %300 = vperm.xlu0 %299, %v261
          %v301 = vpop.permute.xlu0 %300
          %304 = vset.pattern.permute.xlu0 0
          %305 = vperm.xlu0 %304, %v262
          %v306 = vpop.permute.xlu0 %305
          %309 = vset.pattern.permute.xlu0 0
          %310 = vperm.xlu0 %309, %v263
          %v311 = vpop.permute.xlu0 %310
          %314 = vset.pattern.permute.xlu0 0
          %315 = vperm.xlu0 %314, %v264
          %v316 = vpop.permute.xlu0 %315
          %319 = vset.pattern.permute.xlu0 0
          %320 = vperm.xlu0 %319, %v265
          %v321 = vpop.permute.xlu0 %320
          %324 = vset.pattern.permute.xlu0 0
          %325 = vperm.xlu0 %324, %v266
          %v326 = vpop.permute.xlu0 %325
          %329 = vset.pattern.permute.xlu0 0
          %330 = vperm.xlu0 %329, %v267
          %v331 = vpop.permute.xlu0 %330
          %334 = vset.pattern.permute.xlu0 0
          %335 = vperm.xlu0 %334, %v268
          %v336 = vpop.permute.xlu0 %335
          %339 = vset.pattern.permute.xlu0 0
          %340 = vperm.xlu0 %339, %v269
          %v341 = vpop.permute.xlu0 %340
          %344 = vset.pattern.permute.xlu0 0
          %345 = vperm.xlu0 %344, %v270
          %v346 = vpop.permute.xlu0 %345
          %349 = vset.pattern.permute.xlu0 0
          %350 = vperm.xlu0 %349, %v271
          %v351 = vpop.permute.xlu0 %350
          %354 = vset.pattern.permute.xlu0 0
          %355 = vperm.xlu0 %354, %v272
          %v356 = vpop.permute.xlu0 %355
          %359 = vset.pattern.permute.xlu0 0
          %360 = vperm.xlu0 %359, %v273
          %v361 = vpop.permute.xlu0 %360
          %364 = vset.pattern.permute.xlu0 0
          %365 = vperm.xlu0 %364, %v274
          %v366 = vpop.permute.xlu0 %365
          %369 = vset.pattern.permute.xlu0 0
          %370 = vperm.xlu0 %369, %v275
          %v371 = vpop.permute.xlu0 %370
          %374 = vset.pattern.permute.xlu0 0
          %375 = vperm.xlu0 %374, %v276
          %v376 = vpop.permute.xlu0 %375
          %379 = vset.pattern.permute.xlu0 0
          %380 = vperm.xlu0 %379, %v277
          %v381 = vpop.permute.xlu0 %380
          %384 = vset.pattern.permute.xlu0 0
          %385 = vperm.xlu0 %384, %v278
          %v386 = vpop.permute.xlu0 %385
          %389 = vset.pattern.permute.xlu0 0
          %390 = vperm.xlu0 %389, %v279
          %v391 = vpop.permute.xlu0 %390
          %394 = vset.pattern.permute.xlu0 0
          %395 = vperm.xlu0 %394, %v280
          %v396 = vpop.permute.xlu0 %395
          %399 = vset.pattern.permute.xlu0 0
          %400 = vperm.xlu0 %399, %v281
          %v401 = vpop.permute.xlu0 %400
          %404 = vset.pattern.permute.xlu0 0
          %405 = vperm.xlu0 %404, %v282
          %v406 = vpop.permute.xlu0 %405
          %409 = vset.pattern.permute.xlu0 0
          %410 = vperm.xlu0 %409, %v283
          %v411 = vpop.permute.xlu0 %410
          %414 = vset.pattern.permute.xlu0 0
          %415 = vperm.xlu0 %414, %v284
          %v416 = vpop.permute.xlu0 %415
          %419 = vset.pattern.permute.xlu0 0
          %420 = vperm.xlu0 %419, %v285
          %v421 = vpop.permute.xlu0 %420
          %424 = vset.pattern.permute.xlu0 0
          %425 = vperm.xlu0 %424, %v286
          %v426 = vpop.permute.xlu0 %425
          %429 = vset.pattern.permute.xlu0 0
          %430 = vperm.xlu0 %429, %v287
          %v431 = vpop.permute.xlu0 %430
          %434 = vset.pattern.permute.xlu0 0
          %435 = vperm.xlu0 %434, %v288
          %v436 = vpop.permute.xlu0 %435
          %439 = vset.pattern.permute.xlu0 0
          %440 = vperm.xlu0 %439, %v289
          %v441 = vpop.permute.xlu0 %440
          %444 = vset.pattern.permute.xlu0 0
          %445 = vperm.xlu0 %444, %v290
          %v446 = vpop.permute.xlu0 %445
          %449 = vset.pattern.permute.xlu0 0
          %450 = vperm.xlu0 %449, %v291
          %v451 = vpop.permute.xlu0 %450
          %v453 = vperm.slane %v292, 0
          %v454 = vmul.f32 %v296, %v453
          %v455 = vmul.f32 %v301, %v453
          %v456 = vmul.f32 %v306, %v453
          %v457 = vmul.f32 %v311, %v453
          %v458 = vmul.f32 %v316, %v453
          %v459 = vmul.f32 %v321, %v453
          %v460 = vmul.f32 %v326, %v453
          %v461 = vmul.f32 %v331, %v453
          %v462 = vmul.f32 %v336, %v453
          %v463 = vmul.f32 %v341, %v453
          %v464 = vmul.f32 %v346, %v453
          %v465 = vmul.f32 %v351, %v453
          %v466 = vmul.f32 %v356, %v453
          %v467 = vmul.f32 %v361, %v453
          %v468 = vmul.f32 %v366, %v453
          %v469 = vmul.f32 %v371, %v453
          %v470 = vmul.f32 %v376, %v453
          %v471 = vmul.f32 %v381, %v453
          %v472 = vmul.f32 %v386, %v453
          %v473 = vmul.f32 %v391, %v453
          %v474 = vmul.f32 %v396, %v453
          %v475 = vmul.f32 %v401, %v453
          %v476 = vmul.f32 %v406, %v453
          %v477 = vmul.f32 %v411, %v453
          %v478 = vmul.f32 %v416, %v453
          %v479 = vmul.f32 %v421, %v453
          %v480 = vmul.f32 %v426, %v453
          %v481 = vmul.f32 %v431, %v453
          %v482 = vmul.f32 %v436, %v453
          %v483 = vmul.f32 %v441, %v453
          %v484 = vmul.f32 %v446, %v453
          %v485 = vmul.f32 %v451, %v453
          %486 = vset.pattern.permute.xlu0 1
          %487 = vperm.xlu0 %486, %v260
          %v488 = vpop.permute.xlu0 %487
          %490 = vset.pattern.permute.xlu0 1
          %491 = vperm.xlu0 %490, %v261
          %v492 = vpop.permute.xlu0 %491
          %494 = vset.pattern.permute.xlu0 1
          %495 = vperm.xlu0 %494, %v262
          %v496 = vpop.permute.xlu0 %495
          %498 = vset.pattern.permute.xlu0 1
          %499 = vperm.xlu0 %498, %v263
          %v500 = vpop.permute.xlu0 %499
          %502 = vset.pattern.permute.xlu0 1
          %503 = vperm.xlu0 %502, %v264
          %v504 = vpop.permute.xlu0 %503
          %506 = vset.pattern.permute.xlu0 1
          %507 = vperm.xlu0 %506, %v265
          %v508 = vpop.permute.xlu0 %507
          %510 = vset.pattern.permute.xlu0 1
          %511 = vperm.xlu0 %510, %v266
          %v512 = vpop.permute.xlu0 %511
          %514 = vset.pattern.permute.xlu0 1
          %515 = vperm.xlu0 %514, %v267
          %v516 = vpop.permute.xlu0 %515
          %518 = vset.pattern.permute.xlu0 1
          %519 = vperm.xlu0 %518, %v268
          %v520 = vpop.permute.xlu0 %519
          %522 = vset.pattern.permute.xlu0 1
          %523 = vperm.xlu0 %522, %v269
          %v524 = vpop.permute.xlu0 %523
          %526 = vset.pattern.permute.xlu0 1
          %527 = vperm.xlu0 %526, %v270
          %v528 = vpop.permute.xlu0 %527
          %530 = vset.pattern.permute.xlu0 1
          %531 = vperm.xlu0 %530, %v271
          %v532 = vpop.permute.xlu0 %531
          %534 = vset.pattern.permute.xlu0 1
          %535 = vperm.xlu0 %534, %v272
          %v536 = vpop.permute.xlu0 %535
          %538 = vset.pattern.permute.xlu0 1
          %539 = vperm.xlu0 %538, %v273
          %v540 = vpop.permute.xlu0 %539
          %542 = vset.pattern.permute.xlu0 1
          %543 = vperm.xlu0 %542, %v274
          %v544 = vpop.permute.xlu0 %543
          %546 = vset.pattern.permute.xlu0 1
          %547 = vperm.xlu0 %546, %v275
          %v548 = vpop.permute.xlu0 %547
          %550 = vset.pattern.permute.xlu0 1
          %551 = vperm.xlu0 %550, %v276
          %v552 = vpop.permute.xlu0 %551
          %554 = vset.pattern.permute.xlu0 1
          %555 = vperm.xlu0 %554, %v277
          %v556 = vpop.permute.xlu0 %555
          %558 = vset.pattern.permute.xlu0 1
          %559 = vperm.xlu0 %558, %v278
          %v560 = vpop.permute.xlu0 %559
          %562 = vset.pattern.permute.xlu0 1
          %563 = vperm.xlu0 %562, %v279
          %v564 = vpop.permute.xlu0 %563
          %566 = vset.pattern.permute.xlu0 1
          %567 = vperm.xlu0 %566, %v280
          %v568 = vpop.permute.xlu0 %567
          %570 = vset.pattern.permute.xlu0 1
          %571 = vperm.xlu0 %570, %v281
          %v572 = vpop.permute.xlu0 %571
          %574 = vset.pattern.permute.xlu0 1
          %575 = vperm.xlu0 %574, %v282
          %v576 = vpop.permute.xlu0 %575
          %578 = vset.pattern.permute.xlu0 1
          %579 = vperm.xlu0 %578, %v283
          %v580 = vpop.permute.xlu0 %579
          %582 = vset.pattern.permute.xlu0 1
          %583 = vperm.xlu0 %582, %v284
          %v584 = vpop.permute.xlu0 %583
          %586 = vset.pattern.permute.xlu0 1
          %587 = vperm.xlu0 %586, %v285
          %v588 = vpop.permute.xlu0 %587
          %590 = vset.pattern.permute.xlu0 1
          %591 = vperm.xlu0 %590, %v286
          %v592 = vpop.permute.xlu0 %591
          %594 = vset.pattern.permute.xlu0 1
          %595 = vperm.xlu0 %594, %v287
          %v596 = vpop.permute.xlu0 %595
          %598 = vset.pattern.permute.xlu0 1
          %599 = vperm.xlu0 %598, %v288
          %v600 = vpop.permute.xlu0 %599
          %602 = vset.pattern.permute.xlu0 1
          %603 = vperm.xlu0 %602, %v289
          %v604 = vpop.permute.xlu0 %603
          %606 = vset.pattern.permute.xlu0 1
          %607 = vperm.xlu0 %606, %v290
          %v608 = vpop.permute.xlu0 %607
          %610 = vset.pattern.permute.xlu0 1
          %611 = vperm.xlu0 %610, %v291
          %v612 = vpop.permute.xlu0 %611
          %v614 = vperm.slane %v292, 1
          %v615 = vmul.f32 %v488, %v614
          %v616 = vmul.f32 %v492, %v614
          %v617 = vmul.f32 %v496, %v614
          %v618 = vmul.f32 %v500, %v614
          %v619 = vmul.f32 %v504, %v614
          %v620 = vmul.f32 %v508, %v614
          %v621 = vmul.f32 %v512, %v614
          %v622 = vmul.f32 %v516, %v614
          %v623 = vmul.f32 %v520, %v614
          %v624 = vmul.f32 %v524, %v614
          %v625 = vmul.f32 %v528, %v614
          %v626 = vmul.f32 %v532, %v614
          %v627 = vmul.f32 %v536, %v614
          %v628 = vmul.f32 %v540, %v614
          %v629 = vmul.f32 %v544, %v614
          %v630 = vmul.f32 %v548, %v614
          %v631 = vmul.f32 %v552, %v614
          %v632 = vmul.f32 %v556, %v614
          %v633 = vmul.f32 %v560, %v614
          %v634 = vmul.f32 %v564, %v614
          %v635 = vmul.f32 %v568, %v614
          %v636 = vmul.f32 %v572, %v614
          %v637 = vmul.f32 %v576, %v614
          %v638 = vmul.f32 %v580, %v614
          %v639 = vmul.f32 %v584, %v614
          %v640 = vmul.f32 %v588, %v614
          %v641 = vmul.f32 %v592, %v614
          %v642 = vmul.f32 %v596, %v614
          %v643 = vmul.f32 %v600, %v614
          %v644 = vmul.f32 %v604, %v614
          %v645 = vmul.f32 %v608, %v614
          %v646 = vmul.f32 %v612, %v614
          %v647 = vadd.f32 %v454, %v615
          %v648 = vadd.f32 %v455, %v616
          %v649 = vadd.f32 %v456, %v617
          %v650 = vadd.f32 %v457, %v618
          %v651 = vadd.f32 %v458, %v619
          %v652 = vadd.f32 %v459, %v620
          %v653 = vadd.f32 %v460, %v621
          %v654 = vadd.f32 %v461, %v622
          %v655 = vadd.f32 %v462, %v623
          %v656 = vadd.f32 %v463, %v624
          %v657 = vadd.f32 %v464, %v625
          %v658 = vadd.f32 %v465, %v626
          %v659 = vadd.f32 %v466, %v627
          %v660 = vadd.f32 %v467, %v628
          %v661 = vadd.f32 %v468, %v629
          %v662 = vadd.f32 %v469, %v630
          %v663 = vadd.f32 %v470, %v631
          %v664 = vadd.f32 %v471, %v632
          %v665 = vadd.f32 %v472, %v633
          %v666 = vadd.f32 %v473, %v634
          %v667 = vadd.f32 %v474, %v635
          %v668 = vadd.f32 %v475, %v636
          %v669 = vadd.f32 %v476, %v637
          %v670 = vadd.f32 %v477, %v638
          %v671 = vadd.f32 %v478, %v639
          %v672 = vadd.f32 %v479, %v640
          %v673 = vadd.f32 %v480, %v641
          %v674 = vadd.f32 %v481, %v642
          %v675 = vadd.f32 %v482, %v643
          %v676 = vadd.f32 %v483, %v644
          %v677 = vadd.f32 %v484, %v645
          %v678 = vadd.f32 %v485, %v646
          %679 = vset.pattern.permute.xlu0 2
          %680 = vperm.xlu0 %679, %v260
          %v681 = vpop.permute.xlu0 %680
          %683 = vset.pattern.permute.xlu0 2
          %684 = vperm.xlu0 %683, %v261
          %v685 = vpop.permute.xlu0 %684
          %687 = vset.pattern.permute.xlu0 2
          %688 = vperm.xlu0 %687, %v262
          %v689 = vpop.permute.xlu0 %688
          %691 = vset.pattern.permute.xlu0 2
          %692 = vperm.xlu0 %691, %v263
          %v693 = vpop.permute.xlu0 %692
          %695 = vset.pattern.permute.xlu0 2
          %696 = vperm.xlu0 %695, %v264
          %v697 = vpop.permute.xlu0 %696
          %699 = vset.pattern.permute.xlu0 2
          %700 = vperm.xlu0 %699, %v265
          %v701 = vpop.permute.xlu0 %700
          %703 = vset.pattern.permute.xlu0 2
          %704 = vperm.xlu0 %703, %v266
          %v705 = vpop.permute.xlu0 %704
          %707 = vset.pattern.permute.xlu0 2
          %708 = vperm.xlu0 %707, %v267
          %v709 = vpop.permute.xlu0 %708
          %711 = vset.pattern.permute.xlu0 2
          %712 = vperm.xlu0 %711, %v268
          %v713 = vpop.permute.xlu0 %712
          %715 = vset.pattern.permute.xlu0 2
          %716 = vperm.xlu0 %715, %v269
          %v717 = vpop.permute.xlu0 %716
          %719 = vset.pattern.permute.xlu0 2
          %720 = vperm.xlu0 %719, %v270
          %v721 = vpop.permute.xlu0 %720
          %723 = vset.pattern.permute.xlu0 2
          %724 = vperm.xlu0 %723, %v271
          %v725 = vpop.permute.xlu0 %724
          %727 = vset.pattern.permute.xlu0 2
          %728 = vperm.xlu0 %727, %v272
          %v729 = vpop.permute.xlu0 %728
          %731 = vset.pattern.permute.xlu0 2
          %732 = vperm.xlu0 %731, %v273
          %v733 = vpop.permute.xlu0 %732
          %735 = vset.pattern.permute.xlu0 2
          %736 = vperm.xlu0 %735, %v274
          %v737 = vpop.permute.xlu0 %736
          %739 = vset.pattern.permute.xlu0 2
          %740 = vperm.xlu0 %739, %v275
          %v741 = vpop.permute.xlu0 %740
          %743 = vset.pattern.permute.xlu0 2
          %744 = vperm.xlu0 %743, %v276
          %v745 = vpop.permute.xlu0 %744
          %747 = vset.pattern.permute.xlu0 2
          %748 = vperm.xlu0 %747, %v277
          %v749 = vpop.permute.xlu0 %748
          %751 = vset.pattern.permute.xlu0 2
          %752 = vperm.xlu0 %751, %v278
          %v753 = vpop.permute.xlu0 %752
          %755 = vset.pattern.permute.xlu0 2
          %756 = vperm.xlu0 %755, %v279
          %v757 = vpop.permute.xlu0 %756
          %759 = vset.pattern.permute.xlu0 2
          %760 = vperm.xlu0 %759, %v280
          %v761 = vpop.permute.xlu0 %760
          %763 = vset.pattern.permute.xlu0 2
          %764 = vperm.xlu0 %763, %v281
          %v765 = vpop.permute.xlu0 %764
          %767 = vset.pattern.permute.xlu0 2
          %768 = vperm.xlu0 %767, %v282
          %v769 = vpop.permute.xlu0 %768
          %771 = vset.pattern.permute.xlu0 2
          %772 = vperm.xlu0 %771, %v283
          %v773 = vpop.permute.xlu0 %772
          %775 = vset.pattern.permute.xlu0 2
          %776 = vperm.xlu0 %775, %v284
          %v777 = vpop.permute.xlu0 %776
          %779 = vset.pattern.permute.xlu0 2
          %780 = vperm.xlu0 %779, %v285
          %v781 = vpop.permute.xlu0 %780
          %783 = vset.pattern.permute.xlu0 2
          %784 = vperm.xlu0 %783, %v286
          %v785 = vpop.permute.xlu0 %784
          %787 = vset.pattern.permute.xlu0 2
          %788 = vperm.xlu0 %787, %v287
          %v789 = vpop.permute.xlu0 %788
          %791 = vset.pattern.permute.xlu0 2
          %792 = vperm.xlu0 %791, %v288
          %v793 = vpop.permute.xlu0 %792
          %795 = vset.pattern.permute.xlu0 2
          %796 = vperm.xlu0 %795, %v289
          %v797 = vpop.permute.xlu0 %796
          %799 = vset.pattern.permute.xlu0 2
          %800 = vperm.xlu0 %799, %v290
          %v801 = vpop.permute.xlu0 %800
          %803 = vset.pattern.permute.xlu0 2
          %804 = vperm.xlu0 %803, %v291
          %v805 = vpop.permute.xlu0 %804
          %v807 = vperm.slane %v292, 2
          %v808 = vmul.f32 %v681, %v807
          %v809 = vmul.f32 %v685, %v807
          %v810 = vmul.f32 %v689, %v807
          %v811 = vmul.f32 %v693, %v807
          %v812 = vmul.f32 %v697, %v807
          %v813 = vmul.f32 %v701, %v807
          %v814 = vmul.f32 %v705, %v807
          %v815 = vmul.f32 %v709, %v807
          %v816 = vmul.f32 %v713, %v807
          %v817 = vmul.f32 %v717, %v807
          %v818 = vmul.f32 %v721, %v807
          %v819 = vmul.f32 %v725, %v807
          %v820 = vmul.f32 %v729, %v807
          %v821 = vmul.f32 %v733, %v807
          %v822 = vmul.f32 %v737, %v807
          %v823 = vmul.f32 %v741, %v807
          %v824 = vmul.f32 %v745, %v807
          %v825 = vmul.f32 %v749, %v807
          %v826 = vmul.f32 %v753, %v807
          %v827 = vmul.f32 %v757, %v807
          %v828 = vmul.f32 %v761, %v807
          %v829 = vmul.f32 %v765, %v807
          %v830 = vmul.f32 %v769, %v807
          %v831 = vmul.f32 %v773, %v807
          %v832 = vmul.f32 %v777, %v807
          %v833 = vmul.f32 %v781, %v807
          %v834 = vmul.f32 %v785, %v807
          %v835 = vmul.f32 %v789, %v807
          %v836 = vmul.f32 %v793, %v807
          %v837 = vmul.f32 %v797, %v807
          %v838 = vmul.f32 %v801, %v807
          %v839 = vmul.f32 %v805, %v807
          %v840 = vadd.f32 %v647, %v808
          %v841 = vadd.f32 %v648, %v809
          %v842 = vadd.f32 %v649, %v810
          %v843 = vadd.f32 %v650, %v811
          %v844 = vadd.f32 %v651, %v812
          %v845 = vadd.f32 %v652, %v813
          %v846 = vadd.f32 %v653, %v814
          %v847 = vadd.f32 %v654, %v815
          %v848 = vadd.f32 %v655, %v816
          %v849 = vadd.f32 %v656, %v817
          %v850 = vadd.f32 %v657, %v818
          %v851 = vadd.f32 %v658, %v819
          %v852 = vadd.f32 %v659, %v820
          %v853 = vadd.f32 %v660, %v821
          %v854 = vadd.f32 %v661, %v822
          %v855 = vadd.f32 %v662, %v823
          %v856 = vadd.f32 %v663, %v824
          %v857 = vadd.f32 %v664, %v825
          %v858 = vadd.f32 %v665, %v826
          %v859 = vadd.f32 %v666, %v827
          %v860 = vadd.f32 %v667, %v828
          %v861 = vadd.f32 %v668, %v829
          %v862 = vadd.f32 %v669, %v830
          %v863 = vadd.f32 %v670, %v831
          %v864 = vadd.f32 %v671, %v832
          %v865 = vadd.f32 %v672, %v833
          %v866 = vadd.f32 %v673, %v834
          %v867 = vadd.f32 %v674, %v835
          %v868 = vadd.f32 %v675, %v836
          %v869 = vadd.f32 %v676, %v837
          %v870 = vadd.f32 %v677, %v838
          %v871 = vadd.f32 %v678, %v839
          %872 = vst [vmem:[#allocation2] sm:$0xff] %v840
          %873 = vst [vmem:[#allocation2 + $0x8] sm:$0xff] %v841
          %874 = vst [vmem:[#allocation2 + $0x10] sm:$0xff] %v842
          %875 = vst [vmem:[#allocation2 + $0x18] sm:$0xff] %v843
          %876 = vst [vmem:[#allocation2 + $0x20] sm:$0xff] %v844
          %877 = vst [vmem:[#allocation2 + $0x28] sm:$0xff] %v845
          %878 = vst [vmem:[#allocation2 + $0x30] sm:$0xff] %v846
          %879 = vst [vmem:[#allocation2 + $0x38] sm:$0xff] %v847
          %880 = vst [vmem:[#allocation2 + $0x40] sm:$0xff] %v848
          %881 = vst [vmem:[#allocation2 + $0x48] sm:$0xff] %v849
          %882 = vst [vmem:[#allocation2 + $0x50] sm:$0xff] %v850
          %883 = vst [vmem:[#allocation2 + $0x58] sm:$0xff] %v851
          %884 = vst [vmem:[#allocation2 + $0x60] sm:$0xff] %v852
          %885 = vst [vmem:[#allocation2 + $0x68] sm:$0xff] %v853
          %886 = vst [vmem:[#allocation2 + $0x70] sm:$0xff] %v854
          %887 = vst [vmem:[#allocation2 + $0x78] sm:$0xff] %v855
          %888 = vst [vmem:[#allocation2 + $0x80] sm:$0xff] %v856
          %889 = vst [vmem:[#allocation2 + $0x88] sm:$0xff] %v857
          %890 = vst [vmem:[#allocation2 + $0x90] sm:$0xff] %v858
          %891 = vst [vmem:[#allocation2 + $0x98] sm:$0xff] %v859
          %892 = vst [vmem:[#allocation2 + $0xa0] sm:$0xff] %v860
          %893 = vst [vmem:[#allocation2 + $0xa8] sm:$0xff] %v861
          %894 = vst [vmem:[#allocation2 + $0xb0] sm:$0xff] %v862
          %895 = vst [vmem:[#allocation2 + $0xb8] sm:$0xff] %v863
          %896 = vst [vmem:[#allocation2 + $0xc0] sm:$0xff] %v864
          %897 = vst [vmem:[#allocation2 + $0xc8] sm:$0xff] %v865
          %898 = vst [vmem:[#allocation2 + $0xd0] sm:$0xff] %v866
          %899 = vst [vmem:[#allocation2 + $0xd8] sm:$0xff] %v867
          %900 = vst [vmem:[#allocation2 + $0xe0] sm:$0xff] %v868
          %901 = vst [vmem:[#allocation2 + $0xe8] sm:$0xff] %v869
          %902 = vst [vmem:[#allocation2 + $0xf0] sm:$0xff] %v870
          %903 = vst [vmem:[#allocation2 + $0xf8] sm:$0xff] %v871
        $region40: #{tpu_custom_call.1} parent=35 // pred_fallthru
          _
        %v904 = vld [vmem:[%s240] sm:$0xff]
        %v905 = vld [vmem:[%s240 + $0x8] sm:$0xff]
        %v906 = vld [vmem:[%s240 + $0x10] sm:$0xff]
        %v907 = vld [vmem:[%s240 + $0x18] sm:$0xff]
        %v908 = vld [vmem:[%s240 + $0x20] sm:$0xff]
        %v909 = vld [vmem:[%s240 + $0x28] sm:$0xff]
        %v910 = vld [vmem:[%s240 + $0x30] sm:$0xff]
        %v911 = vld [vmem:[%s240 + $0x38] sm:$0xff]
        %v912 = vld [vmem:[%s240 + $0x40] sm:$0xff]
        %v913 = vld [vmem:[%s240 + $0x48] sm:$0xff]
        %v914 = vld [vmem:[%s240 + $0x50] sm:$0xff]
        %v915 = vld [vmem:[%s240 + $0x58] sm:$0xff]
        %v916 = vld [vmem:[%s240 + $0x60] sm:$0xff]
        %v917 = vld [vmem:[%s240 + $0x68] sm:$0xff]
        %v918 = vld [vmem:[%s240 + $0x70] sm:$0xff]
        %v919 = vld [vmem:[%s240 + $0x78] sm:$0xff]
        %v920 = vld [vmem:[%s240 + $0x80] sm:$0xff]
        %v921 = vld [vmem:[%s240 + $0x88] sm:$0xff]
        %v922 = vld [vmem:[%s240 + $0x90] sm:$0xff]
        %v923 = vld [vmem:[%s240 + $0x98] sm:$0xff]
        %v924 = vld [vmem:[%s240 + $0xa0] sm:$0xff]
        %v925 = vld [vmem:[%s240 + $0xa8] sm:$0xff]
        %v926 = vld [vmem:[%s240 + $0xb0] sm:$0xff]
        %v927 = vld [vmem:[%s240 + $0xb8] sm:$0xff]
        %v928 = vld [vmem:[%s240 + $0xc0] sm:$0xff]
        %v929 = vld [vmem:[%s240 + $0xc8] sm:$0xff]
        %v930 = vld [vmem:[%s240 + $0xd0] sm:$0xff]
        %v931 = vld [vmem:[%s240 + $0xd8] sm:$0xff]
        %v932 = vld [vmem:[%s240 + $0xe0] sm:$0xff]
        %v933 = vld [vmem:[%s240 + $0xe8] sm:$0xff]
        %v934 = vld [vmem:[%s240 + $0xf0] sm:$0xff]
        %v935 = vld [vmem:[%s240 + $0xf8] sm:$0xff]
        %v936 = vlaneseq
        %v937 = vand.u32 %v936, 127
        %s938 = smul.u32 %s23, 40
        %v939 = vstv %s938
        %v940 = vadd.s32 %v937, %v939
        %941 = vset.pattern.permute.xlu0 0
        %942 = vperm.xlu0 %941, %v904
        %v943 = vpop.permute.xlu0 %942
        %944 = vset.pattern.permute.xlu0 0
        %945 = vperm.xlu0 %944, %v905
        %v946 = vpop.permute.xlu0 %945
        %947 = vset.pattern.permute.xlu0 0
        %948 = vperm.xlu0 %947, %v906
        %v949 = vpop.permute.xlu0 %948
        %950 = vset.pattern.permute.xlu0 0
        %951 = vperm.xlu0 %950, %v907
        %v952 = vpop.permute.xlu0 %951
        %953 = vset.pattern.permute.xlu0 0
        %954 = vperm.xlu0 %953, %v908
        %v955 = vpop.permute.xlu0 %954
        %956 = vset.pattern.permute.xlu0 0
        %957 = vperm.xlu0 %956, %v909
        %v958 = vpop.permute.xlu0 %957
        %959 = vset.pattern.permute.xlu0 0
        %960 = vperm.xlu0 %959, %v910
        %v961 = vpop.permute.xlu0 %960
        %962 = vset.pattern.permute.xlu0 0
        %963 = vperm.xlu0 %962, %v911
        %v964 = vpop.permute.xlu0 %963
        %965 = vset.pattern.permute.xlu0 0
        %966 = vperm.xlu0 %965, %v912
        %v967 = vpop.permute.xlu0 %966
        %968 = vset.pattern.permute.xlu0 0
        %969 = vperm.xlu0 %968, %v913
        %v970 = vpop.permute.xlu0 %969
        %971 = vset.pattern.permute.xlu0 0
        %972 = vperm.xlu0 %971, %v914
        %v973 = vpop.permute.xlu0 %972
        %974 = vset.pattern.permute.xlu0 0
        %975 = vperm.xlu0 %974, %v915
        %v976 = vpop.permute.xlu0 %975
        %977 = vset.pattern.permute.xlu0 0
        %978 = vperm.xlu0 %977, %v916
        %v979 = vpop.permute.xlu0 %978
        %980 = vset.pattern.permute.xlu0 0
        %981 = vperm.xlu0 %980, %v917
        %v982 = vpop.permute.xlu0 %981
        %983 = vset.pattern.permute.xlu0 0
        %984 = vperm.xlu0 %983, %v918
        %v985 = vpop.permute.xlu0 %984
        %986 = vset.pattern.permute.xlu0 0
        %987 = vperm.xlu0 %986, %v919
        %v988 = vpop.permute.xlu0 %987
        %989 = vset.pattern.permute.xlu0 0
        %990 = vperm.xlu0 %989, %v920
        %v991 = vpop.permute.xlu0 %990
        %992 = vset.pattern.permute.xlu0 0
        %993 = vperm.xlu0 %992, %v921
        %v994 = vpop.permute.xlu0 %993
        %995 = vset.pattern.permute.xlu0 0
        %996 = vperm.xlu0 %995, %v922
        %v997 = vpop.permute.xlu0 %996
        %998 = vset.pattern.permute.xlu0 0
        %999 = vperm.xlu0 %998, %v923
        %v1000 = vpop.permute.xlu0 %999
        %1001 = vset.pattern.permute.xlu0 0
        %1002 = vperm.xlu0 %1001, %v924
        %v1003 = vpop.permute.xlu0 %1002
        %1004 = vset.pattern.permute.xlu0 0
        %1005 = vperm.xlu0 %1004, %v925
        %v1006 = vpop.permute.xlu0 %1005
        %1007 = vset.pattern.permute.xlu0 0
        %1008 = vperm.xlu0 %1007, %v926
        %v1009 = vpop.permute.xlu0 %1008
        %1010 = vset.pattern.permute.xlu0 0
        %1011 = vperm.xlu0 %1010, %v927
        %v1012 = vpop.permute.xlu0 %1011
        %1013 = vset.pattern.permute.xlu0 0
        %1014 = vperm.xlu0 %1013, %v928
        %v1015 = vpop.permute.xlu0 %1014
        %1016 = vset.pattern.permute.xlu0 0
        %1017 = vperm.xlu0 %1016, %v929
        %v1018 = vpop.permute.xlu0 %1017
        %1019 = vset.pattern.permute.xlu0 0
        %1020 = vperm.xlu0 %1019, %v930
        %v1021 = vpop.permute.xlu0 %1020
        %1022 = vset.pattern.permute.xlu0 0
        %1023 = vperm.xlu0 %1022, %v931
        %v1024 = vpop.permute.xlu0 %1023
        %1025 = vset.pattern.permute.xlu0 0
        %1026 = vperm.xlu0 %1025, %v932
        %v1027 = vpop.permute.xlu0 %1026
        %1028 = vset.pattern.permute.xlu0 0
        %1029 = vperm.xlu0 %1028, %v933
        %v1030 = vpop.permute.xlu0 %1029
        %1031 = vset.pattern.permute.xlu0 0
        %1032 = vperm.xlu0 %1031, %v934
        %v1033 = vpop.permute.xlu0 %1032
        %1034 = vset.pattern.permute.xlu0 0
        %1035 = vperm.xlu0 %1034, %v935
        %v1036 = vpop.permute.xlu0 %1035
        %vm1037 = vcmp.eq.s32.totalorder %v943, %v940
        %vm1038 = vcmp.eq.s32.totalorder %v946, %v940
        %vm1039 = vcmp.eq.s32.totalorder %v949, %v940
        %vm1040 = vcmp.eq.s32.totalorder %v952, %v940
        %vm1041 = vcmp.eq.s32.totalorder %v955, %v940
        %vm1042 = vcmp.eq.s32.totalorder %v958, %v940
        %vm1043 = vcmp.eq.s32.totalorder %v961, %v940
        %vm1044 = vcmp.eq.s32.totalorder %v964, %v940
        %vm1045 = vcmp.eq.s32.totalorder %v967, %v940
        %vm1046 = vcmp.eq.s32.totalorder %v970, %v940
        %vm1047 = vcmp.eq.s32.totalorder %v973, %v940
        %vm1048 = vcmp.eq.s32.totalorder %v976, %v940
        %vm1049 = vcmp.eq.s32.totalorder %v979, %v940
        %vm1050 = vcmp.eq.s32.totalorder %v982, %v940
        %vm1051 = vcmp.eq.s32.totalorder %v985, %v940
        %vm1052 = vcmp.eq.s32.totalorder %v988, %v940
        %vm1053 = vcmp.eq.s32.totalorder %v991, %v940
        %vm1054 = vcmp.eq.s32.totalorder %v994, %v940
        %vm1055 = vcmp.eq.s32.totalorder %v997, %v940
        %vm1056 = vcmp.eq.s32.totalorder %v1000, %v940
        %vm1057 = vcmp.eq.s32.totalorder %v1003, %v940
        %vm1058 = vcmp.eq.s32.totalorder %v1006, %v940
        %vm1059 = vcmp.eq.s32.totalorder %v1009, %v940
        %vm1060 = vcmp.eq.s32.totalorder %v1012, %v940
        %vm1061 = vcmp.eq.s32.totalorder %v1015, %v940
        %vm1062 = vcmp.eq.s32.totalorder %v1018, %v940
        %vm1063 = vcmp.eq.s32.totalorder %v1021, %v940
        %vm1064 = vcmp.eq.s32.totalorder %v1024, %v940
        %vm1065 = vcmp.eq.s32.totalorder %v1027, %v940
        %vm1066 = vcmp.eq.s32.totalorder %v1030, %v940
        %vm1067 = vcmp.eq.s32.totalorder %v1033, %v940
        %vm1068 = vcmp.eq.s32.totalorder %v1036, %v940
        %v1069 = vadd.s32 %v904, 32
        %v1070 = vadd.s32 %v905, 32
        %v1071 = vadd.s32 %v906, 32
        %v1072 = vadd.s32 %v907, 32
        %v1073 = vadd.s32 %v908, 32
        %v1074 = vadd.s32 %v909, 32
        %v1075 = vadd.s32 %v910, 32
        %v1076 = vadd.s32 %v911, 32
        %v1077 = vadd.s32 %v912, 32
        %v1078 = vadd.s32 %v913, 32
        %v1079 = vadd.s32 %v914, 32
        %v1080 = vadd.s32 %v915, 32
        %v1081 = vadd.s32 %v916, 32
        %v1082 = vadd.s32 %v917, 32
        %v1083 = vadd.s32 %v918, 32
        %v1084 = vadd.s32 %v919, 32
        %v1085 = vadd.s32 %v920, 32
        %v1086 = vadd.s32 %v921, 32
        %v1087 = vadd.s32 %v922, 32
        %v1088 = vadd.s32 %v923, 32
        %v1089 = vadd.s32 %v924, 32
        %v1090 = vadd.s32 %v925, 32
        %v1091 = vadd.s32 %v926, 32
        %v1092 = vadd.s32 %v927, 32
        %v1093 = vadd.s32 %v928, 32
        %v1094 = vadd.s32 %v929, 32
        %v1095 = vadd.s32 %v930, 32
        %v1096 = vadd.s32 %v931, 32
        %v1097 = vadd.s32 %v932, 32
        %v1098 = vadd.s32 %v933, 32
        %v1099 = vadd.s32 %v934, 32
        %v1100 = vadd.s32 %v935, 32
        %1101 = vset.pattern.permute.xlu0 1
        %1102 = vperm.xlu0 %1101, %v1069
        %v1103 = vpop.permute.xlu0 %1102
        %1104 = vset.pattern.permute.xlu0 1
        %1105 = vperm.xlu0 %1104, %v1070
        %v1106 = vpop.permute.xlu0 %1105
        %1107 = vset.pattern.permute.xlu0 1
        %1108 = vperm.xlu0 %1107, %v1071
        %v1109 = vpop.permute.xlu0 %1108
        %1110 = vset.pattern.permute.xlu0 1
        %1111 = vperm.xlu0 %1110, %v1072
        %v1112 = vpop.permute.xlu0 %1111
        %1113 = vset.pattern.permute.xlu0 1
        %1114 = vperm.xlu0 %1113, %v1073
        %v1115 = vpop.permute.xlu0 %1114
        %1116 = vset.pattern.permute.xlu0 1
        %1117 = vperm.xlu0 %1116, %v1074
        %v1118 = vpop.permute.xlu0 %1117
        %1119 = vset.pattern.permute.xlu0 1
        %1120 = vperm.xlu0 %1119, %v1075
        %v1121 = vpop.permute.xlu0 %1120
        %1122 = vset.pattern.permute.xlu0 1
        %1123 = vperm.xlu0 %1122, %v1076
        %v1124 = vpop.permute.xlu0 %1123
        %1125 = vset.pattern.permute.xlu0 1
        %1126 = vperm.xlu0 %1125, %v1077
        %v1127 = vpop.permute.xlu0 %1126
        %1128 = vset.pattern.permute.xlu0 1
        %1129 = vperm.xlu0 %1128, %v1078
        %v1130 = vpop.permute.xlu0 %1129
        %1131 = vset.pattern.permute.xlu0 1
        %1132 = vperm.xlu0 %1131, %v1079
        %v1133 = vpop.permute.xlu0 %1132
        %1134 = vset.pattern.permute.xlu0 1
        %1135 = vperm.xlu0 %1134, %v1080
        %v1136 = vpop.permute.xlu0 %1135
        %1137 = vset.pattern.permute.xlu0 1
        %1138 = vperm.xlu0 %1137, %v1081
        %v1139 = vpop.permute.xlu0 %1138
        %1140 = vset.pattern.permute.xlu0 1
        %1141 = vperm.xlu0 %1140, %v1082
        %v1142 = vpop.permute.xlu0 %1141
        %1143 = vset.pattern.permute.xlu0 1
        %1144 = vperm.xlu0 %1143, %v1083
        %v1145 = vpop.permute.xlu0 %1144
        %1146 = vset.pattern.permute.xlu0 1
        %1147 = vperm.xlu0 %1146, %v1084
        %v1148 = vpop.permute.xlu0 %1147
        %1149 = vset.pattern.permute.xlu0 1
        %1150 = vperm.xlu0 %1149, %v1085
        %v1151 = vpop.permute.xlu0 %1150
        %1152 = vset.pattern.permute.xlu0 1
        %1153 = vperm.xlu0 %1152, %v1086
        %v1154 = vpop.permute.xlu0 %1153
        %1155 = vset.pattern.permute.xlu0 1
        %1156 = vperm.xlu0 %1155, %v1087
        %v1157 = vpop.permute.xlu0 %1156
        %1158 = vset.pattern.permute.xlu0 1
        %1159 = vperm.xlu0 %1158, %v1088
        %v1160 = vpop.permute.xlu0 %1159
        %1161 = vset.pattern.permute.xlu0 1
        %1162 = vperm.xlu0 %1161, %v1089
        %v1163 = vpop.permute.xlu0 %1162
        %1164 = vset.pattern.permute.xlu0 1
        %1165 = vperm.xlu0 %1164, %v1090
        %v1166 = vpop.permute.xlu0 %1165
        %1167 = vset.pattern.permute.xlu0 1
        %1168 = vperm.xlu0 %1167, %v1091
        %v1169 = vpop.permute.xlu0 %1168
        %1170 = vset.pattern.permute.xlu0 1
        %1171 = vperm.xlu0 %1170, %v1092
        %v1172 = vpop.permute.xlu0 %1171
        %1173 = vset.pattern.permute.xlu0 1
        %1174 = vperm.xlu0 %1173, %v1093
        %v1175 = vpop.permute.xlu0 %1174
        %1176 = vset.pattern.permute.xlu0 1
        %1177 = vperm.xlu0 %1176, %v1094
        %v1178 = vpop.permute.xlu0 %1177
        %1179 = vset.pattern.permute.xlu0 1
        %1180 = vperm.xlu0 %1179, %v1095
        %v1181 = vpop.permute.xlu0 %1180
        %1182 = vset.pattern.permute.xlu0 1
        %1183 = vperm.xlu0 %1182, %v1096
        %v1184 = vpop.permute.xlu0 %1183
        %1185 = vset.pattern.permute.xlu0 1
        %1186 = vperm.xlu0 %1185, %v1097
        %v1187 = vpop.permute.xlu0 %1186
        %1188 = vset.pattern.permute.xlu0 1
        %1189 = vperm.xlu0 %1188, %v1098
        %v1190 = vpop.permute.xlu0 %1189
        %1191 = vset.pattern.permute.xlu0 1
        %1192 = vperm.xlu0 %1191, %v1099
        %v1193 = vpop.permute.xlu0 %1192
        %1194 = vset.pattern.permute.xlu0 1
        %1195 = vperm.xlu0 %1194, %v1100
        %v1196 = vpop.permute.xlu0 %1195
        %vm1197 = vcmp.eq.s32.totalorder %v1103, %v940
        %vm1198 = vcmp.eq.s32.totalorder %v1106, %v940
        %vm1199 = vcmp.eq.s32.totalorder %v1109, %v940
        %vm1200 = vcmp.eq.s32.totalorder %v1112, %v940
        %vm1201 = vcmp.eq.s32.totalorder %v1115, %v940
        %vm1202 = vcmp.eq.s32.totalorder %v1118, %v940
        %vm1203 = vcmp.eq.s32.totalorder %v1121, %v940
        %vm1204 = vcmp.eq.s32.totalorder %v1124, %v940
        %vm1205 = vcmp.eq.s32.totalorder %v1127, %v940
        %vm1206 = vcmp.eq.s32.totalorder %v1130, %v940
        %vm1207 = vcmp.eq.s32.totalorder %v1133, %v940
        %vm1208 = vcmp.eq.s32.totalorder %v1136, %v940
        %vm1209 = vcmp.eq.s32.totalorder %v1139, %v940
        %vm1210 = vcmp.eq.s32.totalorder %v1142, %v940
        %vm1211 = vcmp.eq.s32.totalorder %v1145, %v940
        %vm1212 = vcmp.eq.s32.totalorder %v1148, %v940
        %vm1213 = vcmp.eq.s32.totalorder %v1151, %v940
        %vm1214 = vcmp.eq.s32.totalorder %v1154, %v940
        %vm1215 = vcmp.eq.s32.totalorder %v1157, %v940
        %vm1216 = vcmp.eq.s32.totalorder %v1160, %v940
        %vm1217 = vcmp.eq.s32.totalorder %v1163, %v940
        %vm1218 = vcmp.eq.s32.totalorder %v1166, %v940
        %vm1219 = vcmp.eq.s32.totalorder %v1169, %v940
        %vm1220 = vcmp.eq.s32.totalorder %v1172, %v940
        %vm1221 = vcmp.eq.s32.totalorder %v1175, %v940
        %vm1222 = vcmp.eq.s32.totalorder %v1178, %v940
        %vm1223 = vcmp.eq.s32.totalorder %v1181, %v940
        %vm1224 = vcmp.eq.s32.totalorder %v1184, %v940
        %vm1225 = vcmp.eq.s32.totalorder %v1187, %v940
        %vm1226 = vcmp.eq.s32.totalorder %v1190, %v940
        %vm1227 = vcmp.eq.s32.totalorder %v1193, %v940
        %vm1228 = vcmp.eq.s32.totalorder %v1196, %v940
        %vm1229 = vmor %vm1037, %vm1197
        %vm1230 = vmor %vm1038, %vm1198
        %vm1231 = vmor %vm1039, %vm1199
        %vm1232 = vmor %vm1040, %vm1200
        %vm1233 = vmor %vm1041, %vm1201
        %vm1234 = vmor %vm1042, %vm1202
        %vm1235 = vmor %vm1043, %vm1203
        %vm1236 = vmor %vm1044, %vm1204
        %vm1237 = vmor %vm1045, %vm1205
        %vm1238 = vmor %vm1046, %vm1206
        %vm1239 = vmor %vm1047, %vm1207
        %vm1240 = vmor %vm1048, %vm1208
        %vm1241 = vmor %vm1049, %vm1209
        %vm1242 = vmor %vm1050, %vm1210
        %vm1243 = vmor %vm1051, %vm1211
        %vm1244 = vmor %vm1052, %vm1212
        %vm1245 = vmor %vm1053, %vm1213
        %vm1246 = vmor %vm1054, %vm1214
        %vm1247 = vmor %vm1055, %vm1215
        %vm1248 = vmor %vm1056, %vm1216
        %vm1249 = vmor %vm1057, %vm1217
        %vm1250 = vmor %vm1058, %vm1218
        %vm1251 = vmor %vm1059, %vm1219
        %vm1252 = vmor %vm1060, %vm1220
        %vm1253 = vmor %vm1061, %vm1221
        %vm1254 = vmor %vm1062, %vm1222
        %vm1255 = vmor %vm1063, %vm1223
        %vm1256 = vmor %vm1064, %vm1224
        %vm1257 = vmor %vm1065, %vm1225
        %vm1258 = vmor %vm1066, %vm1226
        %vm1259 = vmor %vm1067, %vm1227
        %vm1260 = vmor %vm1068, %vm1228
        %v1261 = vsel %vm1229, 1, 0
        %v1262 = vsel %vm1230, 1, 0
        %v1263 = vsel %vm1231, 1, 0
        %v1264 = vsel %vm1232, 1, 0
        %v1265 = vsel %vm1233, 1, 0
        %v1266 = vsel %vm1234, 1, 0
        %v1267 = vsel %vm1235, 1, 0
        %v1268 = vsel %vm1236, 1, 0
        %v1269 = vsel %vm1237, 1, 0
        %v1270 = vsel %vm1238, 1, 0
        %v1271 = vsel %vm1239, 1, 0
        %v1272 = vsel %vm1240, 1, 0
        %v1273 = vsel %vm1241, 1, 0
        %v1274 = vsel %vm1242, 1, 0
        %v1275 = vsel %vm1243, 1, 0
        %v1276 = vsel %vm1244, 1, 0
        %v1277 = vsel %vm1245, 1, 0
        %v1278 = vsel %vm1246, 1, 0
        %v1279 = vsel %vm1247, 1, 0
        %v1280 = vsel %vm1248, 1, 0
        %v1281 = vsel %vm1249, 1, 0
        %v1282 = vsel %vm1250, 1, 0
        %v1283 = vsel %vm1251, 1, 0
        %v1284 = vsel %vm1252, 1, 0
        %v1285 = vsel %vm1253, 1, 0
        %v1286 = vsel %vm1254, 1, 0
        %v1287 = vsel %vm1255, 1, 0
        %v1288 = vsel %vm1256, 1, 0
        %v1289 = vsel %vm1257, 1, 0
        %v1290 = vsel %vm1258, 1, 0
        %v1291 = vsel %vm1259, 1, 0
        %v1292 = vsel %vm1260, 1, 0
        %v1293 = vcvt.s32.f32 %v1261
        %v1294 = vcvt.s32.f32 %v1262
        %v1295 = vcvt.s32.f32 %v1263
        %v1296 = vcvt.s32.f32 %v1264
        %v1297 = vcvt.s32.f32 %v1265
        %v1298 = vcvt.s32.f32 %v1266
        %v1299 = vcvt.s32.f32 %v1267
        %v1300 = vcvt.s32.f32 %v1268
        %v1301 = vcvt.s32.f32 %v1269
        %v1302 = vcvt.s32.f32 %v1270
        %v1303 = vcvt.s32.f32 %v1271
        %v1304 = vcvt.s32.f32 %v1272
        %v1305 = vcvt.s32.f32 %v1273
        %v1306 = vcvt.s32.f32 %v1274
        %v1307 = vcvt.s32.f32 %v1275
        %v1308 = vcvt.s32.f32 %v1276
        %v1309 = vcvt.s32.f32 %v1277
        %v1310 = vcvt.s32.f32 %v1278
        %v1311 = vcvt.s32.f32 %v1279
        %v1312 = vcvt.s32.f32 %v1280
        %v1313 = vcvt.s32.f32 %v1281
        %v1314 = vcvt.s32.f32 %v1282
        %v1315 = vcvt.s32.f32 %v1283
        %v1316 = vcvt.s32.f32 %v1284
        %v1317 = vcvt.s32.f32 %v1285
        %v1318 = vcvt.s32.f32 %v1286
        %v1319 = vcvt.s32.f32 %v1287
        %v1320 = vcvt.s32.f32 %v1288
        %v1321 = vcvt.s32.f32 %v1289
        %v1322 = vcvt.s32.f32 %v1290
        %v1323 = vcvt.s32.f32 %v1291
        %v1324 = vcvt.s32.f32 %v1292
        %v1325 = vpack.c.bf16 %v1294, %v1293
        %v1326 = vpack.c.bf16 %v1296, %v1295
        %v1327 = vpack.c.bf16 %v1298, %v1297
        %v1328 = vpack.c.bf16 %v1300, %v1299
        %v1329 = vpack.c.bf16 %v1302, %v1301
        %v1330 = vpack.c.bf16 %v1304, %v1303
        %v1331 = vpack.c.bf16 %v1306, %v1305
        %v1332 = vpack.c.bf16 %v1308, %v1307
        %v1333 = vpack.c.bf16 %v1310, %v1309
        %v1334 = vpack.c.bf16 %v1312, %v1311
        %v1335 = vpack.c.bf16 %v1314, %v1313
        %v1336 = vpack.c.bf16 %v1316, %v1315
        %v1337 = vpack.c.bf16 %v1318, %v1317
        %v1338 = vpack.c.bf16 %v1320, %v1319
        %v1339 = vpack.c.bf16 %v1322, %v1321
        %v1340 = vpack.c.bf16 %v1324, %v1323
        %v1341 = vld [vmem:[#allocation2] sm:$0xff]
        %v1342 = vld [vmem:[#allocation2 + $0x8] sm:$0xff]
        %v1343 = vld [vmem:[#allocation2 + $0x10] sm:$0xff]
        %v1344 = vld [vmem:[#allocation2 + $0x18] sm:$0xff]
        %v1345 = vld [vmem:[#allocation2 + $0x20] sm:$0xff]
        %v1346 = vld [vmem:[#allocation2 + $0x28] sm:$0xff]
        %v1347 = vld [vmem:[#allocation2 + $0x30] sm:$0xff]
        %v1348 = vld [vmem:[#allocation2 + $0x38] sm:$0xff]
        %v1349 = vld [vmem:[#allocation2 + $0x40] sm:$0xff]
        %v1350 = vld [vmem:[#allocation2 + $0x48] sm:$0xff]
        %v1351 = vld [vmem:[#allocation2 + $0x50] sm:$0xff]
        %v1352 = vld [vmem:[#allocation2 + $0x58] sm:$0xff]
        %v1353 = vld [vmem:[#allocation2 + $0x60] sm:$0xff]
        %v1354 = vld [vmem:[#allocation2 + $0x68] sm:$0xff]
        %v1355 = vld [vmem:[#allocation2 + $0x70] sm:$0xff]
        %v1356 = vld [vmem:[#allocation2 + $0x78] sm:$0xff]
        %v1357 = vld [vmem:[#allocation2 + $0x80] sm:$0xff]
        %v1358 = vld [vmem:[#allocation2 + $0x88] sm:$0xff]
        %v1359 = vld [vmem:[#allocation2 + $0x90] sm:$0xff]
        %v1360 = vld [vmem:[#allocation2 + $0x98] sm:$0xff]
        %v1361 = vld [vmem:[#allocation2 + $0xa0] sm:$0xff]
        %v1362 = vld [vmem:[#allocation2 + $0xa8] sm:$0xff]
        %v1363 = vld [vmem:[#allocation2 + $0xb0] sm:$0xff]
        %v1364 = vld [vmem:[#allocation2 + $0xb8] sm:$0xff]
        %v1365 = vld [vmem:[#allocation2 + $0xc0] sm:$0xff]
        %v1366 = vld [vmem:[#allocation2 + $0xc8] sm:$0xff]
        %v1367 = vld [vmem:[#allocation2 + $0xd0] sm:$0xff]
        %v1368 = vld [vmem:[#allocation2 + $0xd8] sm:$0xff]
        %v1369 = vld [vmem:[#allocation2 + $0xe0] sm:$0xff]
        %v1370 = vld [vmem:[#allocation2 + $0xe8] sm:$0xff]
        %v1371 = vld [vmem:[#allocation2 + $0xf0] sm:$0xff]
        %v1372 = vld [vmem:[#allocation2 + $0xf8] sm:$0xff]
        %v1373 = vld [vmem:[%s252] sm:$0xf]
        %v1374 = vld [vmem:[%s252 + $0x4] sm:$0xf]
        %v1375 = vld [vmem:[%s252 + $0x8] sm:$0xf]
        %v1376 = vld [vmem:[%s252 + $0xc] sm:$0xf]
        %v1377 = vld [vmem:[%s252 + $0x10] sm:$0xf]
        %v1383 = vunpack.c.l.b16 %v1373
        %v1384 = vunpack.c.l.b16 %v1374
        %v1385 = vunpack.c.l.b16 %v1375
        %v1386 = vunpack.c.l.b16 %v1376
        %v1387 = vunpack.c.l.b16 %v1377
        %v1388 = vpack.c.b16 %v1384, %v1383
        %v1389 = vpack.c.b16 %v1386, %v1385
        %v1390 = vpack.c.b16 %v1387, %v1387
        %vm1393 = vcmask 326656
        %v1395 = vsel %vm1393, %v1325, 0
        %v1398 = vsel %vm1393, %v1326, 0
        %v1401 = vsel %vm1393, %v1327, 0
        %v1404 = vsel %vm1393, %v1328, 0
        %v1407 = vsel %vm1393, %v1329, 0
        %v1410 = vsel %vm1393, %v1330, 0
        %v1413 = vsel %vm1393, %v1331, 0
        %v1416 = vsel %vm1393, %v1332, 0
        %v1419 = vsel %vm1393, %v1333, 0
        %v1422 = vsel %vm1393, %v1334, 0
        %v1425 = vsel %vm1393, %v1335, 0
        %v1428 = vsel %vm1393, %v1336, 0
        %v1431 = vsel %vm1393, %v1337, 0
        %v1434 = vsel %vm1393, %v1338, 0
        %v1437 = vsel %vm1393, %v1339, 0
        %v1440 = vsel %vm1393, %v1340, 0
        %vm1442 = vcmask 1043456
        %v1444 = vsel %vm1442, %v1390, 0
        %1446 = vmatpush.bf16.msra.mxu0 0
        %1447 = vmatpush.bf16.msra.mxu0 0
        %1448 = vmatpush.bf16.msra.mxu0 0
        %1449 = vmatpush.bf16.msra.mxu0 0
        %1450 = vmatpush.bf16.msra.mxu0 0
        %1451 = vmatpush.bf16.msra.mxu0 %v1444
        %1452 = vmatpush.bf16.msra.mxu0 %v1389
        %1453 = vmatpush.bf16.msra.mxu0 %v1388
        %1454 = vmatmul.bf16.gmra.mxu0 %v1395
        %v1455 = vpop.f32.mrf.mxu0
        %v1456 = vadd.f32 0.0, %v1455
        %v1457 = vpop.f32.mrf.mxu0
        %v1458 = vadd.f32 0.0, %v1457
        %1459 = vmatmul.bf16.gmra.mxu0 %v1398
        %v1460 = vpop.f32.mrf.mxu0
        %v1461 = vadd.f32 0.0, %v1460
        %v1462 = vpop.f32.mrf.mxu0
        %v1463 = vadd.f32 0.0, %v1462
        %1464 = vmatmul.bf16.gmra.mxu0 %v1401
        %v1465 = vpop.f32.mrf.mxu0
        %v1466 = vadd.f32 0.0, %v1465
        %v1467 = vpop.f32.mrf.mxu0
        %v1468 = vadd.f32 0.0, %v1467
        %1469 = vmatmul.bf16.gmra.mxu0 %v1404
        %v1470 = vpop.f32.mrf.mxu0
        %v1471 = vadd.f32 0.0, %v1470
        %v1472 = vpop.f32.mrf.mxu0
        %v1473 = vadd.f32 0.0, %v1472
        %1474 = vmatmul.bf16.gmra.mxu0 %v1407
        %v1475 = vpop.f32.mrf.mxu0
        %v1476 = vadd.f32 0.0, %v1475
        %v1477 = vpop.f32.mrf.mxu0
        %v1478 = vadd.f32 0.0, %v1477
        %1479 = vmatmul.bf16.gmra.mxu0 %v1410
        %v1480 = vpop.f32.mrf.mxu0
        %v1481 = vadd.f32 0.0, %v1480
        %v1482 = vpop.f32.mrf.mxu0
        %v1483 = vadd.f32 0.0, %v1482
        %1484 = vmatmul.bf16.gmra.mxu0 %v1413
        %v1485 = vpop.f32.mrf.mxu0
        %v1486 = vadd.f32 0.0, %v1485
        %v1487 = vpop.f32.mrf.mxu0
        %v1488 = vadd.f32 0.0, %v1487
        %1489 = vmatmul.bf16.gmra.mxu0 %v1416
        %v1490 = vpop.f32.mrf.mxu0
        %v1491 = vadd.f32 0.0, %v1490
        %v1492 = vpop.f32.mrf.mxu0
        %v1493 = vadd.f32 0.0, %v1492
        %1494 = vmatmul.bf16.gmra.mxu0 %v1419
        %v1495 = vpop.f32.mrf.mxu0
        %v1496 = vadd.f32 0.0, %v1495
        %v1497 = vpop.f32.mrf.mxu0
        %v1498 = vadd.f32 0.0, %v1497
        %1499 = vmatmul.bf16.gmra.mxu0 %v1422
        %v1500 = vpop.f32.mrf.mxu0
        %v1501 = vadd.f32 0.0, %v1500
        %v1502 = vpop.f32.mrf.mxu0
        %v1503 = vadd.f32 0.0, %v1502
        %1504 = vmatmul.bf16.gmra.mxu0 %v1425
        %v1505 = vpop.f32.mrf.mxu0
        %v1506 = vadd.f32 0.0, %v1505
        %v1507 = vpop.f32.mrf.mxu0
        %v1508 = vadd.f32 0.0, %v1507
        %1509 = vmatmul.bf16.gmra.mxu0 %v1428
        %v1510 = vpop.f32.mrf.mxu0
        %v1511 = vadd.f32 0.0, %v1510
        %v1512 = vpop.f32.mrf.mxu0
        %v1513 = vadd.f32 0.0, %v1512
        %1514 = vmatmul.bf16.gmra.mxu0 %v1431
        %v1515 = vpop.f32.mrf.mxu0
        %v1516 = vadd.f32 0.0, %v1515
        %v1517 = vpop.f32.mrf.mxu0
        %v1518 = vadd.f32 0.0, %v1517
        %1519 = vmatmul.bf16.gmra.mxu0 %v1434
        %v1520 = vpop.f32.mrf.mxu0
        %v1521 = vadd.f32 0.0, %v1520
        %v1522 = vpop.f32.mrf.mxu0
        %v1523 = vadd.f32 0.0, %v1522
        %1524 = vmatmul.bf16.gmra.mxu0 %v1437
        %v1525 = vpop.f32.mrf.mxu0
        %v1526 = vadd.f32 0.0, %v1525
        %v1527 = vpop.f32.mrf.mxu0
        %v1528 = vadd.f32 0.0, %v1527
        %1529 = vmatmul.bf16.gmra.mxu0 %v1440
        %v1530 = vpop.f32.mrf.mxu0
        %v1531 = vadd.f32 0.0, %v1530
        %v1532 = vpop.f32.mrf.mxu0
        %v1533 = vadd.f32 0.0, %v1532
        %1534 = vdwg.mxu0
        %v1535 = vadd.f32 %v1341, %v1456
        %v1536 = vadd.f32 %v1342, %v1458
        %v1537 = vadd.f32 %v1343, %v1461
        %v1538 = vadd.f32 %v1344, %v1463
        %v1539 = vadd.f32 %v1345, %v1466
        %v1540 = vadd.f32 %v1346, %v1468
        %v1541 = vadd.f32 %v1347, %v1471
        %v1542 = vadd.f32 %v1348, %v1473
        %v1543 = vadd.f32 %v1349, %v1476
        %v1544 = vadd.f32 %v1350, %v1478
        %v1545 = vadd.f32 %v1351, %v1481
        %v1546 = vadd.f32 %v1352, %v1483
        %v1547 = vadd.f32 %v1353, %v1486
        %v1548 = vadd.f32 %v1354, %v1488
        %v1549 = vadd.f32 %v1355, %v1491
        %v1550 = vadd.f32 %v1356, %v1493
        %v1551 = vadd.f32 %v1357, %v1496
        %v1552 = vadd.f32 %v1358, %v1498
        %v1553 = vadd.f32 %v1359, %v1501
        %v1554 = vadd.f32 %v1360, %v1503
        %v1555 = vadd.f32 %v1361, %v1506
        %v1556 = vadd.f32 %v1362, %v1508
        %v1557 = vadd.f32 %v1363, %v1511
        %v1558 = vadd.f32 %v1364, %v1513
        %v1559 = vadd.f32 %v1365, %v1516
        %v1560 = vadd.f32 %v1366, %v1518
        %v1561 = vadd.f32 %v1367, %v1521
        %v1562 = vadd.f32 %v1368, %v1523
        %v1563 = vadd.f32 %v1369, %v1526
        %v1564 = vadd.f32 %v1370, %v1528
        %v1565 = vadd.f32 %v1371, %v1531
        %v1566 = vadd.f32 %v1372, %v1533
        %1567 = vst [vmem:[#allocation2] sm:$0xff] %v1535
        %1568 = vst [vmem:[#allocation2 + $0x8] sm:$0xff] %v1536
        %1569 = vst [vmem:[#allocation2 + $0x10] sm:$0xff] %v1537
        %1570 = vst [vmem:[#allocation2 + $0x18] sm:$0xff] %v1538
        %1571 = vst [vmem:[#allocation2 + $0x20] sm:$0xff] %v1539
        %1572 = vst [vmem:[#allocation2 + $0x28] sm:$0xff] %v1540
        %1573 = vst [vmem:[#allocation2 + $0x30] sm:$0xff] %v1541
        %1574 = vst [vmem:[#allocation2 + $0x38] sm:$0xff] %v1542
        %1575 = vst [vmem:[#allocation2 + $0x40] sm:$0xff] %v1543
        %1576 = vst [vmem:[#allocation2 + $0x48] sm:$0xff] %v1544
        %1577 = vst [vmem:[#allocation2 + $0x50] sm:$0xff] %v1545
        %1578 = vst [vmem:[#allocation2 + $0x58] sm:$0xff] %v1546
        %1579 = vst [vmem:[#allocation2 + $0x60] sm:$0xff] %v1547
        %1580 = vst [vmem:[#allocation2 + $0x68] sm:$0xff] %v1548
        %1581 = vst [vmem:[#allocation2 + $0x70] sm:$0xff] %v1549
        %1582 = vst [vmem:[#allocation2 + $0x78] sm:$0xff] %v1550
        %1583 = vst [vmem:[#allocation2 + $0x80] sm:$0xff] %v1551
        %1584 = vst [vmem:[#allocation2 + $0x88] sm:$0xff] %v1552
        %1585 = vst [vmem:[#allocation2 + $0x90] sm:$0xff] %v1553
        %1586 = vst [vmem:[#allocation2 + $0x98] sm:$0xff] %v1554
        %1587 = vst [vmem:[#allocation2 + $0xa0] sm:$0xff] %v1555
        %1588 = vst [vmem:[#allocation2 + $0xa8] sm:$0xff] %v1556
        %1589 = vst [vmem:[#allocation2 + $0xb0] sm:$0xff] %v1557
        %1590 = vst [vmem:[#allocation2 + $0xb8] sm:$0xff] %v1558
        %1591 = vst [vmem:[#allocation2 + $0xc0] sm:$0xff] %v1559
        %1592 = vst [vmem:[#allocation2 + $0xc8] sm:$0xff] %v1560
        %1593 = vst [vmem:[#allocation2 + $0xd0] sm:$0xff] %v1561
        %1594 = vst [vmem:[#allocation2 + $0xd8] sm:$0xff] %v1562
        %1595 = vst [vmem:[#allocation2 + $0xe0] sm:$0xff] %v1563
        %1596 = vst [vmem:[#allocation2 + $0xe8] sm:$0xff] %v1564
        %1597 = vst [vmem:[#allocation2 + $0xf0] sm:$0xff] %v1565
        %1598 = vst [vmem:[#allocation2 + $0xf8] sm:$0xff] %v1566
        // Predicated region
        $region41: #{tpu_custom_call.1} parent=35 // pred_check
          %p1599 = pneg %p256
        $region42: #{tpu_custom_call.1} parent=35 // pred_check_branch
          %1601 = sbr.rel (%p1599) target = $region44
        $region43: #{tpu_custom_call.1} parent=35 // pred_region
          %v1602 = vld [vmem:[#allocation2] sm:$0xff]
          %v1603 = vld [vmem:[#allocation2 + $0x8] sm:$0xff]
          %v1604 = vld [vmem:[#allocation2 + $0x10] sm:$0xff]
          %v1605 = vld [vmem:[#allocation2 + $0x18] sm:$0xff]
          %v1606 = vld [vmem:[#allocation2 + $0x20] sm:$0xff]
          %v1607 = vld [vmem:[#allocation2 + $0x28] sm:$0xff]
          %v1608 = vld [vmem:[#allocation2 + $0x30] sm:$0xff]
          %v1609 = vld [vmem:[#allocation2 + $0x38] sm:$0xff]
          %v1610 = vld [vmem:[#allocation2 + $0x40] sm:$0xff]
          %v1611 = vld [vmem:[#allocation2 + $0x48] sm:$0xff]
          %v1612 = vld [vmem:[#allocation2 + $0x50] sm:$0xff]
          %v1613 = vld [vmem:[#allocation2 + $0x58] sm:$0xff]
          %v1614 = vld [vmem:[#allocation2 + $0x60] sm:$0xff]
          %v1615 = vld [vmem:[#allocation2 + $0x68] sm:$0xff]
          %v1616 = vld [vmem:[#allocation2 + $0x70] sm:$0xff]
          %v1617 = vld [vmem:[#allocation2 + $0x78] sm:$0xff]
          %v1618 = vld [vmem:[#allocation2 + $0x80] sm:$0xff]
          %v1619 = vld [vmem:[#allocation2 + $0x88] sm:$0xff]
          %v1620 = vld [vmem:[#allocation2 + $0x90] sm:$0xff]
          %v1621 = vld [vmem:[#allocation2 + $0x98] sm:$0xff]
          %v1622 = vld [vmem:[#allocation2 + $0xa0] sm:$0xff]
          %v1623 = vld [vmem:[#allocation2 + $0xa8] sm:$0xff]
          %v1624 = vld [vmem:[#allocation2 + $0xb0] sm:$0xff]
          %v1625 = vld [vmem:[#allocation2 + $0xb8] sm:$0xff]
          %v1626 = vld [vmem:[#allocation2 + $0xc0] sm:$0xff]
          %v1627 = vld [vmem:[#allocation2 + $0xc8] sm:$0xff]
          %v1628 = vld [vmem:[#allocation2 + $0xd0] sm:$0xff]
          %v1629 = vld [vmem:[#allocation2 + $0xd8] sm:$0xff]
          %v1630 = vld [vmem:[#allocation2 + $0xe0] sm:$0xff]
          %v1631 = vld [vmem:[#allocation2 + $0xe8] sm:$0xff]
          %v1632 = vld [vmem:[#allocation2 + $0xf0] sm:$0xff]
          %v1633 = vld [vmem:[#allocation2 + $0xf8] sm:$0xff]
          %1634 = vst [vmem:[%s235] sm:$0xff] %v1602
          %1635 = vst [vmem:[%s235 + $0x8] sm:$0xff] %v1603
          %1636 = vst [vmem:[%s235 + $0x10] sm:$0xff] %v1604
          %1637 = vst [vmem:[%s235 + $0x18] sm:$0xff] %v1605
          %1638 = vst [vmem:[%s235 + $0x20] sm:$0xff] %v1606
          %1639 = vst [vmem:[%s235 + $0x28] sm:$0xff] %v1607
          %1640 = vst [vmem:[%s235 + $0x30] sm:$0xff] %v1608
          %1641 = vst [vmem:[%s235 + $0x38] sm:$0xff] %v1609
          %1642 = vst [vmem:[%s235 + $0x40] sm:$0xff] %v1610
          %1643 = vst [vmem:[%s235 + $0x48] sm:$0xff] %v1611
          %1644 = vst [vmem:[%s235 + $0x50] sm:$0xff] %v1612
          %1645 = vst [vmem:[%s235 + $0x58] sm:$0xff] %v1613
          %1646 = vst [vmem:[%s235 + $0x60] sm:$0xff] %v1614
          %1647 = vst [vmem:[%s235 + $0x68] sm:$0xff] %v1615
          %1648 = vst [vmem:[%s235 + $0x70] sm:$0xff] %v1616
          %1649 = vst [vmem:[%s235 + $0x78] sm:$0xff] %v1617
          %1650 = vst [vmem:[%s235 + $0x80] sm:$0xff] %v1618
          %1651 = vst [vmem:[%s235 + $0x88] sm:$0xff] %v1619
          %1652 = vst [vmem:[%s235 + $0x90] sm:$0xff] %v1620
          %1653 = vst [vmem:[%s235 + $0x98] sm:$0xff] %v1621
          %1654 = vst [vmem:[%s235 + $0xa0] sm:$0xff] %v1622
          %1655 = vst [vmem:[%s235 + $0xa8] sm:$0xff] %v1623
          %1656 = vst [vmem:[%s235 + $0xb0] sm:$0xff] %v1624
          %1657 = vst [vmem:[%s235 + $0xb8] sm:$0xff] %v1625
          %1658 = vst [vmem:[%s235 + $0xc0] sm:$0xff] %v1626
          %1659 = vst [vmem:[%s235 + $0xc8] sm:$0xff] %v1627
          %1660 = vst [vmem:[%s235 + $0xd0] sm:$0xff] %v1628
          %1661 = vst [vmem:[%s235 + $0xd8] sm:$0xff] %v1629
          %1662 = vst [vmem:[%s235 + $0xe0] sm:$0xff] %v1630
          %1663 = vst [vmem:[%s235 + $0xe8] sm:$0xff] %v1631
          %1664 = vst [vmem:[%s235 + $0xf0] sm:$0xff] %v1632
          %1665 = vst [vmem:[%s235 + $0xf8] sm:$0xff] %v1633
        $region44: #{tpu_custom_call.1} parent=35 // pred_fallthru
          _
        %s1666 = sand.u32 %s137, 1
        %s1667 = scalar_lea.sflag [#allocation4], %s1666
        %s1668 = sand.u32 %s137, 1
        %s1669 = smul.addr %s1668, 256
        %s1670 = scalar_lea.vmem [#allocation3], %s1669
        // Predicated region
        $region45: #{tpu_custom_call.1} parent=35 // pred_check
          %p1671 = pneg %p147
        $region46: #{tpu_custom_call.1} parent=35 // pred_check_branch
          %1673 = sbr.rel (%p1671) target = $region48
        $region47: #{tpu_custom_call.1} parent=35 // pred_region
          %s1674 = smul.u32 32, %s22
          %1676 = vsyncadd %s1667, 0
          %s1677 = smul.addr %s1674, 8
          %s1678 = scalar_lea.hbm %s4, %s1677
          %s1679 = sshll.u32 %s1670, 4
          %s1680 = int_to_ptr.vmem [resolvable:$true] %s1679
          %s1681 = sshll.u32 %s1678, 4
          %s1682 = int_to_ptr.hbm [resolvable:$true] %s1681
          %1687 = dma.vmem_to_hbm [thread:$0]  %s1680, 4096, %s1682, %s1667, 128, 128, 8
        $region48: #{tpu_custom_call.1} parent=35 // pred_fallthru
          _
      $region36: #{tpu_custom_call.1} parent=5 // pred_fallthru
        _
      %p1688 = scmp.le.s32.totalorder 2, %s13
      // Predicated region
      $region49: #{tpu_custom_call.1} parent=5 // pred_check
        %p1689 = pneg %p1688
      $region50: #{tpu_custom_call.1} parent=5 // pred_check_branch
        %1691 = sbr.rel (%p1689) target = $region52
      $region51: #{tpu_custom_call.1} parent=5 // pred_region
        %s1692 = ssub.s32 %s13, 2
        // Predicated region
        $region53: #{tpu_custom_call.1} parent=51 // pred_check
          %p1693 = pneg %p153
        $region54: #{tpu_custom_call.1} parent=51 // pred_check_branch
          %1695 = sbr.rel (%p1693) target = $region56
        $region55: #{tpu_custom_call.1} parent=51 // pred_region
          %s1696 = sand.u32 %s138, 1
          %s1697 = scalar_lea.sflag [#allocation4], %s1696
          %s1698 = sand.u32 %s138, 1
          %s1699 = smul.addr %s1698, 256
          %s1700 = scalar_lea.vmem [#allocation3], %s1699
          %1702 = dma.done %s1697, 4096
        $region56: #{tpu_custom_call.1} parent=51 // pred_fallthru
          _
      $region52: #{tpu_custom_call.1} parent=5 // pred_fallthru
        _
    $region6: #{tpu_custom_call.1} parent=1 // loop_footer
      %s17 = sadd.s32 1, %s13
    $region7: #{tpu_custom_call.1} parent=1 // loop_footer_branch
      %12 = sbr.rel target = $region3
    $region8: #{tpu_custom_call.1} parent=1 // loop_exit
      _
    %1703 = vsyncpa [#allocation4], 1
    %s1704 = scalar_lea.sflag [#allocation4], 1
    %1705 = vsyncpa %s1704, 1

</llo_original>
